<compile_context>
chip_gen: v6e
topology: v6e:2x2x1
jax: 0.10.0
libtpu: 0.0.40
codegen_flags: <defaults>
</compile_context>

<pallas_src>
import functools
import math

import jax
import jax.numpy as jnp
from jax import lax
from jax.experimental import pallas as pl
from jax.experimental.pallas import tpu as pltpu


def _mha_kernel(q_ref, k_ref, v_ref,
                wq_ref, bq_ref, wk_ref, bk_ref, wv_ref, bv_ref, wo_ref, bo_ref,
                out_ref, kp_ref, vp_ref,
                *, n_heads: int, d_k: int, approx_recip: bool):
    """One grid step = one (batch, query-block) tile.

    Grid is (B, S // TQ); the query-block axis is "arbitrary" so the K/V
    projections can be computed once per batch (at qi == 0) into persistent
    VMEM scratch (kp_ref / vp_ref) and reused by every query block of that
    batch instead of being redone S/TQ times.
    """
    f32 = jnp.float32
    cdt = kp_ref.dtype          # matmul-operand (compute) dtype, e.g. bf16

    # ---- K/V projections: once per batch, not once per query block -------
    @pl.when(pl.program_id(1) == 0)
    def _():
        x_k = k_ref[0]          # (S, D)
        x_v = v_ref[0]          # (S, D)
        kp = jnp.dot(x_k, wk_ref[...], preferred_element_type=f32) + bk_ref[...]
        vp = jnp.dot(x_v, wv_ref[...], preferred_element_type=f32) + bv_ref[...]
        kp_ref[...] = kp.astype(cdt)      # cast once, right after the bias add
        vp_ref[...] = vp.astype(cdt)

    # ---- Q projection for this query block (1/sqrt(d_k) baked into wq/bq) -
    x_q = q_ref[0]                                            # (TQ, D)
    qp = (jnp.dot(x_q, wq_ref[...], preferred_element_type=f32)
          + bq_ref[...]).astype(cdt)                          # single cast pass

    kp = kp_ref[...]                                          # (S, D) cdt
    vp = vp_ref[...]                                          # (S, D) cdt

    tq, d_model = qp.shape

    # Per-head attention, folding each head's context straight into the output
    # projection (no attn slab -> no d_k-wide masked stores, no store->load
    # round trip before the final matmul).
    # TODO(synk): for many heads / very long S, bound live ranges with a head
    # grid axis and a KV-block online-softmax accumulator instead of this
    # unrolled loop over full-S scores.
    out_acc = jnp.zeros((tq, d_model), f32)
    for h in range(n_heads):
        sl = slice(h * d_k, (h + 1) * d_k)
        q_h = qp[:, sl]                                       # (TQ, d_k)
        k_h = kp[:, sl]                                       # (S,  d_k)
        v_h = vp[:, sl]                                       # (S,  d_k)

        # scores = q_h @ k_h^T as a contraction on the d_k axis (no transpose).
        scores = lax.dot_general(
            q_h, k_h,
            dimension_numbers=(((1,), (1,)), ((), ())),
            preferred_element_type=f32)                       # (TQ, S)

        # Numerically stable softmax in f32 (v5e VPU/EUP have no bf16 path).
        scores = scores - jnp.max(scores, axis=-1, keepdims=True)
        probs = jnp.exp(scores)
        denom = jnp.sum(probs, axis=-1, keepdims=True)
        if approx_recip:
            probs = probs * pl.reciprocal(denom, approx=True)  # EUP slot
        else:
            probs = probs / denom                              # exact f32 parity
        # Dropout on probs is identity in eval mode.
        # TODO(synk): stochastic dropout via pltpu.prng_random_bits if
        # training-mode parity is ever needed.

        ctx = jnp.dot(probs.astype(cdt), v_h,
                      preferred_element_type=f32)             # (TQ, d_k)
        out_acc = out_acc + jnp.dot(
            ctx.astype(cdt), wo_ref[sl, :], preferred_element_type=f32)

    out_ref[0] = (out_acc + bo_ref[...]).astype(out_ref.dtype)


def multi_head_attention(q, k, v, params, *, n_heads: int,
                         compute_dtype=jnp.bfloat16, out_dtype=None):
    """Forward pass of MultiHeadAttention (dropout == identity / eval mode)."""
    B, S, D = q.shape
    assert D % n_heads == 0
    assert S % 8 == 0, "pad the sequence length to a multiple of 8"
    d_k = D // n_heads
    scale = 1.0 / math.sqrt(d_k)
    cdt = compute_dtype
    odt = cdt if out_dtype is None else out_dtype
    f32 = jnp.float32

    # Pre-transpose weights once in the wrapper (torch: y = x @ W.T + b) and
    # bake the 1/sqrt(d_k) attention scale into the q projection.
    wq_t = (params["wq"].T * scale).astype(cdt)
    wk_t = params["wk"].T.astype(cdt)
    wv_t = params["wv"].T.astype(cdt)
    wo_t = params["wo"].T.astype(cdt)
    bq = (params["bq"] * scale).reshape(1, D).astype(f32)
    bk = params["bk"].reshape(1, D).astype(f32)
    bv = params["bv"].reshape(1, D).astype(f32)
    bo = params["bo"].reshape(1, D).astype(f32)

    qc = q.astype(cdt)
    kc = k.astype(cdt)
    vc = v.astype(cdt)

    # Query-block size: prefer 512 / 256 (fills the 256-wide MXU on v6e/v7x and
    # amortizes per-step overhead); 128 only as a fallback (fine for v5e's
    # 4x128 MXU); else the whole sequence.
    tq = next((c for c in (512, 256, 128) if S % c == 0), S)
    grid = (B, S // tq)
    # TODO(synk): for very long S, add a KV-block grid axis with an
    # online-softmax accumulator instead of full-S K/V scratch; and when B==1
    # with a single query block, split heads onto a parallel axis so v7x's two
    # TensorCores both get work.

    q_spec = pl.BlockSpec((1, tq, D), lambda b, qi: (b, qi, 0))
    kv_spec = pl.BlockSpec((1, S, D), lambda b, qi: (b, 0, 0))  # DMA'd once per batch
    w_spec = pl.BlockSpec((D, D), lambda b, qi: (0, 0))         # grid-invariant
    b_spec = pl.BlockSpec((1, D), lambda b, qi: (0, 0))         # grid-invariant
    out_spec = pl.BlockSpec((1, tq, D), lambda b, qi: (b, qi, 0))

    cbytes = jnp.dtype(cdt).itemsize
    obytes = jnp.dtype(odt).itemsize
    cost = pl.CostEstimate(
        flops=B * (8 * S * D * D + 4 * S * S * D),
        transcendentals=B * n_heads * S * S,
        bytes_accessed=(3 * B * S * D * cbytes      # q, k, v
                        + 4 * D * D * cbytes        # weights
                        + 4 * D * 4                 # biases (f32)
                        + B * S * D * obytes),      # output
    )

    kernel = functools.partial(
        _mha_kernel, n_heads=n_heads, d_k=d_k,
        approx_recip=(jnp.dtype(cdt) != jnp.dtype(jnp.float32)))

    return pl.pallas_call(
        kernel,
        out_shape=jax.ShapeDtypeStruct((B, S, D), odt),
        grid=grid,
        in_specs=[q_spec, kv_spec, kv_spec,
                  w_spec, b_spec, w_spec, b_spec,
                  w_spec, b_spec, w_spec, b_spec],
        out_specs=out_spec,
        scratch_shapes=[pltpu.VMEM((S, D), cdt),    # projected K (per batch)
                        pltpu.VMEM((S, D), cdt)],   # projected V (per batch)
        compiler_params=pltpu.CompilerParams(
            # qi must be "arbitrary": the K/V scratch filled at qi == 0 is
            # reused by the later query blocks of the same batch.
            dimension_semantics=("parallel", "arbitrary"),
            vmem_limit_bytes=48 * 1024 * 1024),
        cost_estimate=cost,
    )(qc, kc, vc, wq_t, bq, wk_t, bk, wv_t, bv, wo_t, bo)


def _reference_mha(q, k, v, params, *, n_heads: int):
    """Plain-JAX f32 reference mirroring the torch forward (dropout == identity)."""
    B, S, D = q.shape
    d_k = D // n_heads

    def lin(x, w, b):
        return jnp.einsum("bsd,ed->bse", x, w) + b

    qp = lin(q, params["wq"], params["bq"]).reshape(B, S, n_heads, d_k).transpose(0, 2, 1, 3)
    kp = lin(k, params["wk"], params["bk"]).reshape(B, S, n_heads, d_k).transpose(0, 2, 1, 3)
    vp = lin(v, params["wv"], params["bv"]).reshape(B, S, n_heads, d_k).transpose(0, 2, 1, 3)

    scores = jnp.einsum("bhqd,bhkd->bhqk", qp, kp) / math.sqrt(d_k)
    probs = jax.nn.softmax(scores, axis=-1)
    out = jnp.einsum("bhqk,bhkd->bhqd", probs, vp)
    out = out.transpose(0, 2, 1, 3).reshape(B, S, D)
    return lin(out, params["wo"], params["bo"])


if __name__ == "__main__":
    B, S, D, H = 2, 8, 32, 4

    key = jax.random.PRNGKey(0)
    keys = jax.random.split(key, 12)

    # Deterministic synthetic parameters (torch Linear shapes: W (D,D), b (D,))
    scale = 1.0 / math.sqrt(D)
    params = {
        "wq": jax.random.uniform(keys[0], (D, D), jnp.float32, -scale, scale),
        "bq": jax.random.uniform(keys[1], (D,), jnp.float32, -scale, scale),
        "wk": jax.random.uniform(keys[2], (D, D), jnp.float32, -scale, scale),
        "bk": jax.random.uniform(keys[3], (D,), jnp.float32, -scale, scale),
        "wv": jax.random.uniform(keys[4], (D, D), jnp.float32, -scale, scale),
        "bv": jax.random.uniform(keys[5], (D,), jnp.float32, -scale, scale),
        "wo": jax.random.uniform(keys[6], (D, D), jnp.float32, -scale, scale),
        "bo": jax.random.uniform(keys[7], (D,), jnp.float32, -scale, scale),
    }

    q = jax.random.normal(keys[8], (B, S, D), jnp.float32)
    k = jax.random.normal(keys[9], (B, S, D), jnp.float32)
    v = jax.random.normal(keys[10], (B, S, D), jnp.float32)

    ref = _reference_mha(q, k, v, params, n_heads=H)

    # f32 compute path (exact divide, f32 output): tight numerical check.
    out_f32 = multi_head_attention(q, k, v, params, n_heads=H,
                                   compute_dtype=jnp.float32)
    out_f32 = jax.block_until_ready(out_f32)
    assert out_f32.shape == (B, S, D) and out_f32.dtype == jnp.float32
    assert jnp.allclose(out_f32, ref, atol=1e-3, rtol=1e-3), "f32 mismatch vs reference"

    # bf16 MXU operands / f32 accumulation, bf16 output: looser tolerance.
    out_bf16 = multi_head_attention(q, k, v, params, n_heads=H,
                                    compute_dtype=jnp.bfloat16)
    out_bf16 = jax.block_until_ready(out_bf16)
    assert out_bf16.shape == (B, S, D) and out_bf16.dtype == jnp.bfloat16
    assert jnp.allclose(out_bf16.astype(jnp.float32), ref,
                        atol=5e-2, rtol=5e-2), "bf16 mismatch vs reference"

    print("KERNEL_OK")
</pallas_src>

<mosaic_0001>
module attributes {stable_mosaic.version = 11 : i64} {
  func.func @_mha_kernel(%arg0: i32, %arg1: i32, %arg2: memref<1x8x32xf32, #tpu.memory_space<vmem>>, %arg3: memref<1x8x32xf32, #tpu.memory_space<vmem>>, %arg4: memref<1x8x32xf32, #tpu.memory_space<vmem>>, %arg5: memref<32x32xf32, #tpu.memory_space<vmem>>, %arg6: memref<1x32xf32, #tpu.memory_space<vmem>>, %arg7: memref<32x32xf32, #tpu.memory_space<vmem>>, %arg8: memref<1x32xf32, #tpu.memory_space<vmem>>, %arg9: memref<32x32xf32, #tpu.memory_space<vmem>>, %arg10: memref<1x32xf32, #tpu.memory_space<vmem>>, %arg11: memref<32x32xf32, #tpu.memory_space<vmem>>, %arg12: memref<1x32xf32, #tpu.memory_space<vmem>>, %arg13: memref<1x8x32xf32, #tpu.memory_space<vmem>>, %arg14: memref<8x32xf32, #tpu.memory_space<vmem>>, %arg15: memref<8x32xf32, #tpu.memory_space<vmem>>) attributes {dimension_semantics = [#tpu.dimension_semantics<parallel>, #tpu.dimension_semantics<arbitrary>], iteration_bounds = array<i64: 2, 1>, scalar_prefetch = 0 : i64, scratch_operands = 2 : i64, tpu.core_type = #tpu.core_type<tc>, window_params = [{transform_indices = @transform_0, window_bounds = array<i64: 1, 8, 32>}, {transform_indices = @transform_1, window_bounds = array<i64: 1, 8, 32>}, {transform_indices = @transform_2, window_bounds = array<i64: 1, 8, 32>}, {pipeline_mode = #tpu.pipeline_mode<synchronous>, transform_indices = @transform_3, window_bounds = array<i64: 32, 32>}, {pipeline_mode = #tpu.pipeline_mode<synchronous>, transform_indices = @transform_4, window_bounds = array<i64: 1, 32>}, {pipeline_mode = #tpu.pipeline_mode<synchronous>, transform_indices = @transform_5, window_bounds = array<i64: 32, 32>}, {pipeline_mode = #tpu.pipeline_mode<synchronous>, transform_indices = @transform_6, window_bounds = array<i64: 1, 32>}, {pipeline_mode = #tpu.pipeline_mode<synchronous>, transform_indices = @transform_7, window_bounds = array<i64: 32, 32>}, {pipeline_mode = #tpu.pipeline_mode<synchronous>, transform_indices = @transform_8, window_bounds = array<i64: 1, 32>}, {pipeline_mode = #tpu.pipeline_mode<synchronous>, transform_indices = @transform_9, window_bounds = array<i64: 32, 32>}, {pipeline_mode = #tpu.pipeline_mode<synchronous>, transform_indices = @transform_10, window_bounds = array<i64: 1, 32>}, {transform_indices = @transform_11, window_bounds = array<i64: 1, 8, 32>}]} {
    %c0_i32 = arith.constant 0 : i32
    %0 = arith.cmpi eq, %arg1, %c0_i32 : i32
    %1 = arith.extui %0 : i1 to i32
    %c0_i32_0 = arith.constant 0 : i32
    %2 = arith.cmpi ne, %1, %c0_i32_0 : i32
    scf.if %2 {
      %c0_42 = arith.constant 0 : index
      %c0_43 = arith.constant 0 : index
      %c0_44 = arith.constant 0 : index
      %87 = vector.load %arg3[%c0_42, %c0_43, %c0_44] : memref<1x8x32xf32, #tpu.memory_space<vmem>>, vector<1x8x32xf32>
      %88 = vector.shape_cast %87 : vector<1x8x32xf32> to vector<8x32xf32>
      %c0_45 = arith.constant 0 : index
      %c0_46 = arith.constant 0 : index
      %c0_47 = arith.constant 0 : index
      %89 = vector.load %arg4[%c0_45, %c0_46, %c0_47] : memref<1x8x32xf32, #tpu.memory_space<vmem>>, vector<1x8x32xf32>
      %90 = vector.shape_cast %89 : vector<1x8x32xf32> to vector<8x32xf32>
      %c0_48 = arith.constant 0 : index
      %c0_49 = arith.constant 0 : index
      %91 = vector.load %arg7[%c0_48, %c0_49] : memref<32x32xf32, #tpu.memory_space<vmem>>, vector<32x32xf32>
      %cst_50 = arith.constant dense<0.000000e+00> : vector<8x32xf32>
      %92 = tpu.matmul %88, %91, %cst_50 {dimension_numbers = #tpu.dot_dimension_numbers<[1], [0], [0], [1], [0, 0, 1, 1], [], []>} : vector<8x32xf32>, vector<32x32xf32>, vector<8x32xf32> -> vector<8x32xf32>
      %c0_51 = arith.constant 0 : index
      %c0_52 = arith.constant 0 : index
      %93 = vector.load %arg8[%c0_51, %c0_52] : memref<1x32xf32, #tpu.memory_space<vmem>>, vector<1x32xf32>
      %94 = vector.broadcast %93 : vector<1x32xf32> to vector<8x32xf32>
      %95 = arith.addf %92, %94 : vector<8x32xf32>
      %c0_53 = arith.constant 0 : index
      %c0_54 = arith.constant 0 : index
      %96 = vector.load %arg9[%c0_53, %c0_54] : memref<32x32xf32, #tpu.memory_space<vmem>>, vector<32x32xf32>
      %cst_55 = arith.constant dense<0.000000e+00> : vector<8x32xf32>
      %97 = tpu.matmul %90, %96, %cst_55 {dimension_numbers = #tpu.dot_dimension_numbers<[1], [0], [0], [1], [0, 0, 1, 1], [], []>} : vector<8x32xf32>, vector<32x32xf32>, vector<8x32xf32> -> vector<8x32xf32>
      %c0_56 = arith.constant 0 : index
      %c0_57 = arith.constant 0 : index
      %98 = vector.load %arg10[%c0_56, %c0_57] : memref<1x32xf32, #tpu.memory_space<vmem>>, vector<1x32xf32>
      %99 = vector.broadcast %98 : vector<1x32xf32> to vector<8x32xf32>
      %100 = arith.addf %97, %99 : vector<8x32xf32>
      %c0_58 = arith.constant 0 : index
      %c0_59 = arith.constant 0 : index
      %101 = vector.load %arg14[%c0_58, %c0_59] : memref<8x32xf32, #tpu.memory_space<vmem>>, vector<8x32xf32>
      tpu.vector_store %arg14[%c0_58, %c0_59], %95 {strides = array<i32>} : memref<8x32xf32, #tpu.memory_space<vmem>>, vector<8x32xf32>,
      %c0_60 = arith.constant 0 : index
      %c0_61 = arith.constant 0 : index
      %102 = vector.load %arg15[%c0_60, %c0_61] : memref<8x32xf32, #tpu.memory_space<vmem>>, vector<8x32xf32>
      tpu.vector_store %arg15[%c0_60, %c0_61], %100 {strides = array<i32>} : memref<8x32xf32, #tpu.memory_space<vmem>>, vector<8x32xf32>,
    } else {
    }
    %c0 = arith.constant 0 : index
    %c0_1 = arith.constant 0 : index
    %c0_2 = arith.constant 0 : index
    %3 = vector.load %arg2[%c0, %c0_1, %c0_2] : memref<1x8x32xf32, #tpu.memory_space<vmem>>, vector<1x8x32xf32>
    %4 = vector.shape_cast %3 : vector<1x8x32xf32> to vector<8x32xf32>
    %c0_3 = arith.constant 0 : index
    %c0_4 = arith.constant 0 : index
    %5 = vector.load %arg5[%c0_3, %c0_4] : memref<32x32xf32, #tpu.memory_space<vmem>>, vector<32x32xf32>
    %cst = arith.constant dense<0.000000e+00> : vector<8x32xf32>
    %6 = tpu.matmul %4, %5, %cst {dimension_numbers = #tpu.dot_dimension_numbers<[1], [0], [0], [1], [0, 0, 1, 1], [], []>} : vector<8x32xf32>, vector<32x32xf32>, vector<8x32xf32> -> vector<8x32xf32>
    %c0_5 = arith.constant 0 : index
    %c0_6 = arith.constant 0 : index
    %7 = vector.load %arg6[%c0_5, %c0_6] : memref<1x32xf32, #tpu.memory_space<vmem>>, vector<1x32xf32>
    %8 = vector.broadcast %7 : vector<1x32xf32> to vector<8x32xf32>
    %9 = arith.addf %6, %8 : vector<8x32xf32>
    %c0_7 = arith.constant 0 : index
    %c0_8 = arith.constant 0 : index
    %10 = vector.load %arg14[%c0_7, %c0_8] : memref<8x32xf32, #tpu.memory_space<vmem>>, vector<8x32xf32>
    %c0_9 = arith.constant 0 : index
    %c0_10 = arith.constant 0 : index
    %11 = vector.load %arg15[%c0_9, %c0_10] : memref<8x32xf32, #tpu.memory_space<vmem>>, vector<8x32xf32>
    %cst_11 = arith.constant 0.000000e+00 : f32
    %12 = vector.broadcast %cst_11 : f32 to vector<8x32xf32>
    %13 = vector.extract_strided_slice %9 {offsets = [0, 0], sizes = [8, 8], strides = [1, 1]} : vector<8x32xf32> to vector<8x8xf32>
    %14 = vector.extract_strided_slice %10 {offsets = [0, 0], sizes = [8, 8], strides = [1, 1]} : vector<8x32xf32> to vector<8x8xf32>
    %15 = vector.extract_strided_slice %11 {offsets = [0, 0], sizes = [8, 8], strides = [1, 1]} : vector<8x32xf32> to vector<8x8xf32>
    %cst_12 = arith.constant dense<0.000000e+00> : vector<8x8xf32>
    %16 = tpu.matmul %13, %14, %cst_12 {dimension_numbers = #tpu.dot_dimension_numbers<[1], [1], [0], [0], [0, 0, 1, 0], [], []>} : vector<8x8xf32>, vector<8x8xf32>, vector<8x8xf32> -> vector<8x8xf32>
    %cst_13 = arith.constant dense<0xFF800000> : vector<8xf32>
    %17 = vector.multi_reduction <maximumf>, %16, %cst_13 [1] : vector<8x8xf32> to vector<8xf32>
    %18 = vector.shape_cast %17 : vector<8xf32> to vector<8x1xf32>
    %19 = vector.broadcast %18 : vector<8x1xf32> to vector<8x8xf32>
    %20 = arith.subf %16, %19 : vector<8x8xf32>
    %21 = math.exp %20 : vector<8x8xf32>
    %cst_14 = arith.constant dense<0.000000e+00> : vector<8xf32>
    %22 = vector.multi_reduction <add>, %21, %cst_14 [1] : vector<8x8xf32> to vector<8xf32>
    %23 = vector.shape_cast %22 : vector<8xf32> to vector<8x1xf32>
    %24 = vector.broadcast %23 : vector<8x1xf32> to vector<8x8xf32>
    %25 = arith.divf %21, %24 : vector<8x8xf32>
    %cst_15 = arith.constant dense<0.000000e+00> : vector<8x8xf32>
    %26 = tpu.matmul %25, %15, %cst_15 {dimension_numbers = #tpu.dot_dimension_numbers<[1], [0], [0], [1], [0, 0, 1, 1], [], []>} : vector<8x8xf32>, vector<8x8xf32>, vector<8x8xf32> -> vector<8x8xf32>
    %c0_16 = arith.constant 0 : index
    %c0_17 = arith.constant 0 : index
    %27 = vector.load %arg11[%c0_16, %c0_17] : memref<32x32xf32, #tpu.memory_space<vmem>>, vector<8x32xf32>
    %cst_18 = arith.constant dense<0.000000e+00> : vector<8x32xf32>
    %28 = tpu.matmul %26, %27, %cst_18 {dimension_numbers = #tpu.dot_dimension_numbers<[1], [0], [0], [1], [0, 0, 1, 1], [], []>} : vector<8x8xf32>, vector<8x32xf32>, vector<8x32xf32> -> vector<8x32xf32>
    %29 = arith.addf %12, %28 : vector<8x32xf32>
    %30 = vector.extract_strided_slice %9 {offsets = [0, 8], sizes = [8, 8], strides = [1, 1]} : vector<8x32xf32> to vector<8x8xf32>
    %31 = vector.extract_strided_slice %10 {offsets = [0, 8], sizes = [8, 8], strides = [1, 1]} : vector<8x32xf32> to vector<8x8xf32>
    %32 = vector.extract_strided_slice %11 {offsets = [0, 8], sizes = [8, 8], strides = [1, 1]} : vector<8x32xf32> to vector<8x8xf32>
    %cst_19 = arith.constant dense<0.000000e+00> : vector<8x8xf32>
    %33 = tpu.matmul %30, %31, %cst_19 {dimension_numbers = #tpu.dot_dimension_numbers<[1], [1], [0], [0], [0, 0, 1, 0], [], []>} : vector<8x8xf32>, vector<8x8xf32>, vector<8x8xf32> -> vector<8x8xf32>
    %cst_20 = arith.constant dense<0xFF800000> : vector<8xf32>
    %34 = vector.multi_reduction <maximumf>, %33, %cst_20 [1] : vector<8x8xf32> to vector<8xf32>
    %35 = vector.shape_cast %34 : vector<8xf32> to vector<8x1xf32>
    %36 = vector.broadcast %35 : vector<8x1xf32> to vector<8x8xf32>
    %37 = arith.subf %33, %36 : vector<8x8xf32>
    %38 = math.exp %37 : vector<8x8xf32>
    %cst_21 = arith.constant dense<0.000000e+00> : vector<8xf32>
    %39 = vector.multi_reduction <add>, %38, %cst_21 [1] : vector<8x8xf32> to vector<8xf32>
    %40 = vector.shape_cast %39 : vector<8xf32> to vector<8x1xf32>
    %41 = vector.broadcast %40 : vector<8x1xf32> to vector<8x8xf32>
    %42 = arith.divf %38, %41 : vector<8x8xf32>
    %cst_22 = arith.constant dense<0.000000e+00> : vector<8x8xf32>
    %43 = tpu.matmul %42, %32, %cst_22 {dimension_numbers = #tpu.dot_dimension_numbers<[1], [0], [0], [1], [0, 0, 1, 1], [], []>} : vector<8x8xf32>, vector<8x8xf32>, vector<8x8xf32> -> vector<8x8xf32>
    %c8 = arith.constant 8 : index
    %c0_23 = arith.constant 0 : index
    %44 = vector.load %arg11[%c8, %c0_23] : memref<32x32xf32, #tpu.memory_space<vmem>>, vector<8x32xf32>
    %cst_24 = arith.constant dense<0.000000e+00> : vector<8x32xf32>
    %45 = tpu.matmul %43, %44, %cst_24 {dimension_numbers = #tpu.dot_dimension_numbers<[1], [0], [0], [1], [0, 0, 1, 1], [], []>} : vector<8x8xf32>, vector<8x32xf32>, vector<8x32xf32> -> vector<8x32xf32>
    %46 = arith.addf %29, %45 : vector<8x32xf32>
    %47 = vector.extract_strided_slice %9 {offsets = [0, 16], sizes = [8, 8], strides = [1, 1]} : vector<8x32xf32> to vector<8x8xf32>
    %48 = vector.extract_strided_slice %10 {offsets = [0, 16], sizes = [8, 8], strides = [1, 1]} : vector<8x32xf32> to vector<8x8xf32>
    %49 = vector.extract_strided_slice %11 {offsets = [0, 16], sizes = [8, 8], strides = [1, 1]} : vector<8x32xf32> to vector<8x8xf32>
    %cst_25 = arith.constant dense<0.000000e+00> : vector<8x8xf32>
    %50 = tpu.matmul %47, %48, %cst_25 {dimension_numbers = #tpu.dot_dimension_numbers<[1], [1], [0], [0], [0, 0, 1, 0], [], []>} : vector<8x8xf32>, vector<8x8xf32>, vector<8x8xf32> -> vector<8x8xf32>
    %cst_26 = arith.constant dense<0xFF800000> : vector<8xf32>
    %51 = vector.multi_reduction <maximumf>, %50, %cst_26 [1] : vector<8x8xf32> to vector<8xf32>
    %52 = vector.shape_cast %51 : vector<8xf32> to vector<8x1xf32>
    %53 = vector.broadcast %52 : vector<8x1xf32> to vector<8x8xf32>
    %54 = arith.subf %50, %53 : vector<8x8xf32>
    %55 = math.exp %54 : vector<8x8xf32>
    %cst_27 = arith.constant dense<0.000000e+00> : vector<8xf32>
    %56 = vector.multi_reduction <add>, %55, %cst_27 [1] : vector<8x8xf32> to vector<8xf32>
    %57 = vector.shape_cast %56 : vector<8xf32> to vector<8x1xf32>
    %58 = vector.broadcast %57 : vector<8x1xf32> to vector<8x8xf32>
    %59 = arith.divf %55, %58 : vector<8x8xf32>
    %cst_28 = arith.constant dense<0.000000e+00> : vector<8x8xf32>
    %60 = tpu.matmul %59, %49, %cst_28 {dimension_numbers = #tpu.dot_dimension_numbers<[1], [0], [0], [1], [0, 0, 1, 1], [], []>} : vector<8x8xf32>, vector<8x8xf32>, vector<8x8xf32> -> vector<8x8xf32>
    %c16 = arith.constant 16 : index
    %c0_29 = arith.constant 0 : index
    %61 = vector.load %arg11[%c16, %c0_29] : memref<32x32xf32, #tpu.memory_space<vmem>>, vector<8x32xf32>
    %cst_30 = arith.constant dense<0.000000e+00> : vector<8x32xf32>
    %62 = tpu.matmul %60, %61, %cst_30 {dimension_numbers = #tpu.dot_dimension_numbers<[1], [0], [0], [1], [0, 0, 1, 1], [], []>} : vector<8x8xf32>, vector<8x32xf32>, vector<8x32xf32> -> vector<8x32xf32>
    %63 = arith.addf %46, %62 : vector<8x32xf32>
    %64 = vector.extract_strided_slice %9 {offsets = [0, 24], sizes = [8, 8], strides = [1, 1]} : vector<8x32xf32> to vector<8x8xf32>
    %65 = vector.extract_strided_slice %10 {offsets = [0, 24], sizes = [8, 8], strides = [1, 1]} : vector<8x32xf32> to vector<8x8xf32>
    %66 = vector.extract_strided_slice %11 {offsets = [0, 24], sizes = [8, 8], strides = [1, 1]} : vector<8x32xf32> to vector<8x8xf32>
    %cst_31 = arith.constant dense<0.000000e+00> : vector<8x8xf32>
    %67 = tpu.matmul %64, %65, %cst_31 {dimension_numbers = #tpu.dot_dimension_numbers<[1], [1], [0], [0], [0, 0, 1, 0], [], []>} : vector<8x8xf32>, vector<8x8xf32>, vector<8x8xf32> -> vector<8x8xf32>
    %cst_32 = arith.constant dense<0xFF800000> : vector<8xf32>
    %68 = vector.multi_reduction <maximumf>, %67, %cst_32 [1] : vector<8x8xf32> to vector<8xf32>
    %69 = vector.shape_cast %68 : vector<8xf32> to vector<8x1xf32>
    %70 = vector.broadcast %69 : vector<8x1xf32> to vector<8x8xf32>
    %71 = arith.subf %67, %70 : vector<8x8xf32>
    %72 = math.exp %71 : vector<8x8xf32>
    %cst_33 = arith.constant dense<0.000000e+00> : vector<8xf32>
    %73 = vector.multi_reduction <add>, %72, %cst_33 [1] : vector<8x8xf32> to vector<8xf32>
    %74 = vector.shape_cast %73 : vector<8xf32> to vector<8x1xf32>
    %75 = vector.broadcast %74 : vector<8x1xf32> to vector<8x8xf32>
    %76 = arith.divf %72, %75 : vector<8x8xf32>
    %cst_34 = arith.constant dense<0.000000e+00> : vector<8x8xf32>
    %77 = tpu.matmul %76, %66, %cst_34 {dimension_numbers = #tpu.dot_dimension_numbers<[1], [0], [0], [1], [0, 0, 1, 1], [], []>} : vector<8x8xf32>, vector<8x8xf32>, vector<8x8xf32> -> vector<8x8xf32>
    %c24 = arith.constant 24 : index
    %c0_35 = arith.constant 0 : index
    %78 = vector.load %arg11[%c24, %c0_35] : memref<32x32xf32, #tpu.memory_space<vmem>>, vector<8x32xf32>
    %cst_36 = arith.constant dense<0.000000e+00> : vector<8x32xf32>
    %79 = tpu.matmul %77, %78, %cst_36 {dimension_numbers = #tpu.dot_dimension_numbers<[1], [0], [0], [1], [0, 0, 1, 1], [], []>} : vector<8x8xf32>, vector<8x32xf32>, vector<8x32xf32> -> vector<8x32xf32>
    %80 = arith.addf %63, %79 : vector<8x32xf32>
    %c0_37 = arith.constant 0 : index
    %c0_38 = arith.constant 0 : index
    %81 = vector.load %arg12[%c0_37, %c0_38] : memref<1x32xf32, #tpu.memory_space<vmem>>, vector<1x32xf32>
    %82 = vector.broadcast %81 : vector<1x32xf32> to vector<8x32xf32>
    %83 = arith.addf %80, %82 : vector<8x32xf32>
    %c0_39 = arith.constant 0 : index
    %c0_40 = arith.constant 0 : index
    %c0_41 = arith.constant 0 : index
    %84 = vector.load %arg13[%c0_39, %c0_40, %c0_41] : memref<1x8x32xf32, #tpu.memory_space<vmem>>, vector<1x8x32xf32>
    %85 = vector.shape_cast %84 : vector<1x8x32xf32> to vector<8x32xf32>
    %86 = vector.shape_cast %83 : vector<8x32xf32> to vector<1x8x32xf32>
    tpu.vector_store %arg13[%c0_39, %c0_40, %c0_41], %86 {strides = array<i32>} : memref<1x8x32xf32, #tpu.memory_space<vmem>>, vector<1x8x32xf32>,
    return
  }
  func.func @transform_0(%arg0: i32, %arg1: i32) -> (i32, i32, i32) {
    %c0_i32 = arith.constant 0 : i32
    %c0_i32_0 = arith.constant 0 : i32
    return %arg0, %arg1, %c0_i32 : i32, i32, i32
  }
  func.func @transform_1(%arg0: i32, %arg1: i32) -> (i32, i32, i32) {
    %c0_i32 = arith.constant 0 : i32
    %c0_i32_0 = arith.constant 0 : i32
    %c0_i32_1 = arith.constant 0 : i32
    return %arg0, %c0_i32, %c0_i32_0 : i32, i32, i32
  }
  func.func @transform_2(%arg0: i32, %arg1: i32) -> (i32, i32, i32) {
    %c0_i32 = arith.constant 0 : i32
    %c0_i32_0 = arith.constant 0 : i32
    %c0_i32_1 = arith.constant 0 : i32
    return %arg0, %c0_i32, %c0_i32_0 : i32, i32, i32
  }
  func.func @transform_3(%arg0: i32, %arg1: i32) -> (i32, i32) {
    %c0_i32 = arith.constant 0 : i32
    %c0_i32_0 = arith.constant 0 : i32
    %c0_i32_1 = arith.constant 0 : i32
    return %c0_i32, %c0_i32_0 : i32, i32
  }
  func.func @transform_4(%arg0: i32, %arg1: i32) -> (i32, i32) {
    %c0_i32 = arith.constant 0 : i32
    %c0_i32_0 = arith.constant 0 : i32
    %c0_i32_1 = arith.constant 0 : i32
    return %c0_i32, %c0_i32_0 : i32, i32
  }
  func.func @transform_5(%arg0: i32, %arg1: i32) -> (i32, i32) {
    %c0_i32 = arith.constant 0 : i32
    %c0_i32_0 = arith.constant 0 : i32
    %c0_i32_1 = arith.constant 0 : i32
    return %c0_i32, %c0_i32_0 : i32, i32
  }
  func.func @transform_6(%arg0: i32, %arg1: i32) -> (i32, i32) {
    %c0_i32 = arith.constant 0 : i32
    %c0_i32_0 = arith.constant 0 : i32
    %c0_i32_1 = arith.constant 0 : i32
    return %c0_i32, %c0_i32_0 : i32, i32
  }
  func.func @transform_7(%arg0: i32, %arg1: i32) -> (i32, i32) {
    %c0_i32 = arith.constant 0 : i32
    %c0_i32_0 = arith.constant 0 : i32
    %c0_i32_1 = arith.constant 0 : i32
    return %c0_i32, %c0_i32_0 : i32, i32
  }
  func.func @transform_8(%arg0: i32, %arg1: i32) -> (i32, i32) {
    %c0_i32 = arith.constant 0 : i32
    %c0_i32_0 = arith.constant 0 : i32
    %c0_i32_1 = arith.constant 0 : i32
    return %c0_i32, %c0_i32_0 : i32, i32
  }
  func.func @transform_9(%arg0: i32, %arg1: i32) -> (i32, i32) {
    %c0_i32 = arith.constant 0 : i32
    %c0_i32_0 = arith.constant 0 : i32
    %c0_i32_1 = arith.constant 0 : i32
    return %c0_i32, %c0_i32_0 : i32, i32
  }
  func.func @transform_10(%arg0: i32, %arg1: i32) -> (i32, i32) {
    %c0_i32 = arith.constant 0 : i32
    %c0_i32_0 = arith.constant 0 : i32
    %c0_i32_1 = arith.constant 0 : i32
    return %c0_i32, %c0_i32_0 : i32, i32
  }
  func.func @transform_11(%arg0: i32, %arg1: i32) -> (i32, i32, i32) {
    %c0_i32 = arith.constant 0 : i32
    %c0_i32_0 = arith.constant 0 : i32
    return %arg0, %arg1, %c0_i32 : i32, i32, i32
  }
}

</mosaic_0001>

<llo_original>
// kernel: tpu_custom_call.1
$region0: #{tpu_custom_call.1}
  #allocation0 [shape = 'u32[]', space=smem, size = 0x4, offset = 0x4, fixed_abs, tag = 'smem constant byte address 0x4 - core index']
  #allocation1 [shape = 'u32[144,128]{1,0:T(1,128)}', space=vmem, size = 0x12000, scoped, tag = 'internal scratch']
  #allocation2 [shape = 'f32[8,32]{1,0:T(8,128)}', space=vmem, size = 0x1000, scoped, tag = 'scratch operand']
  #allocation3 [shape = 'f32[8,32]{1,0:T(8,128)}', space=vmem, size = 0x1000, scoped, tag = 'scratch operand']
  %s0 = inlined_call_operand.hbm [shape: f32[2,8,32], index: 0, kind: input, shape index: {}]
  %s1 = inlined_call_operand.hbm [shape: f32[2,8,32], index: 1, kind: input, shape index: {}]
  %s2 = inlined_call_operand.hbm [shape: f32[2,8,32], index: 2, kind: input, shape index: {}]
  %s3 = inlined_call_operand.hbm [shape: f32[32,32], index: 3, kind: input, shape index: {}]
  %s4 = inlined_call_operand.vmem [shape: f32[1,32], index: 4, kind: input, shape index: {}]
  %s5 = inlined_call_operand.hbm [shape: f32[32,32], index: 5, kind: input, shape index: {}]
  %s6 = inlined_call_operand.vmem [shape: f32[1,32], index: 6, kind: input, shape index: {}]
  %s7 = inlined_call_operand.hbm [shape: f32[32,32], index: 7, kind: input, shape index: {}]
  %s8 = inlined_call_operand.vmem [shape: f32[1,32], index: 8, kind: input, shape index: {}]
  %s9 = inlined_call_operand.hbm [shape: f32[32,32], index: 9, kind: input, shape index: {}]
  %s10 = inlined_call_operand.vmem [shape: f32[1,32], index: 10, kind: input, shape index: {}]
  %s11 = inlined_call_operand.hbm [shape: f32[2,8,32], index: 11, kind: output, shape index: {}]
  %s12 = sld [smem:[#allocation0]]
  $region109: #{tpu_custom_call.1} parent=0
    _
  %s14 = ssub.s32 1, %s12
  %s15 = scalar_select 0, %s14, %s12
  $region1: #{tpu_custom_call.1} parent=0
    #allocation4 [shape = 'u8[8192]{0}', space=vmem, size = 0x2000, scoped, tag = 'input window, operand 0']
    #allocation5 [shape = 's32[2]{0}', space=sflag, size = 0x8, scoped, tag = 'scoped memory for tpu_custom_call.1']
    #allocation6 [shape = 's32[2]{0}', space=sflag, size = 0x8, scoped, tag = 'scoped memory for tpu_custom_call.1']
    #allocation7 [shape = 'u8[8192]{0}', space=vmem, size = 0x2000, scoped, tag = 'input window, operand 1']
    #allocation8 [shape = 's32[2]{0}', space=sflag, size = 0x8, scoped, tag = 'scoped memory for tpu_custom_call.1']
    #allocation9 [shape = 'u8[8192]{0}', space=vmem, size = 0x2000, scoped, tag = 'input window, operand 2']
    #allocation10 [shape = 'u8[16384]{0}', space=vmem, size = 0x4000, scoped, tag = 'input window, operand 3, single buffered']
    #allocation11 [shape = 's32[1]{0}', space=sflag, size = 0x4, scoped, tag = 'scoped memory for tpu_custom_call.1']
    #allocation12 [shape = 'u8[16384]{0}', space=vmem, size = 0x4000, scoped, tag = 'input window, operand 5, single buffered']
    #allocation13 [shape = 'u8[16384]{0}', space=vmem, size = 0x4000, scoped, tag = 'input window, operand 7, single buffered']
    #allocation14 [shape = 's32[1]{0}', space=sflag, size = 0x4, scoped, tag = 'scoped memory for tpu_custom_call.1']
    #allocation15 [shape = 'u8[16384]{0}', space=vmem, size = 0x4000, scoped, tag = 'input window, operand 9, single buffered']
    #allocation16 [shape = 'u8[8192]{0}', space=vmem, size = 0x2000, scoped, tag = 'output window, operand 0']
    %16 = vsyncpa [#allocation5], 0
    %s17 = scalar_lea.sflag [#allocation5], 1
    %18 = vsyncpa %s17, 0
    %19 = vsyncpa [#allocation8], 0
    %s20 = scalar_lea.sflag [#allocation8], 1
    %21 = vsyncpa %s20, 0
    %22 = vsyncpa [#allocation11], 0
    %23 = vsyncpa [#allocation14], 0
    %24 = vsyncpa [#allocation6], 0
    %s25 = scalar_lea.sflag [#allocation6], 1
    %26 = vsyncpa %s25, 0
    loop: start=0, step=1, limit=4
    $region2: #{tpu_custom_call.1} parent=1 // loop_pre_header
      _
    $region3: #{tpu_custom_call.1} parent=1 // loop_header
      %s28 = sphi 0, %s32
      %p29 = scmp.ge.s32.totalorder %s28, 4
      %s35 = sphi 0, %s47
      %s36 = sphi 0, %s43
      %s37 = sphi 0, %s35
      %s38 = sphi 0, %s36
      %s39 = sphi 0, %s37
      %s40 = sphi 0, %s38
      %s52 = sphi 0, %s54
      %s55 = sphi 0, %s52
      %s56 = sphi 0, %s55
      %s72 = sphi 0, %s56
      %s78 = sphi 0, %s80
      %s81 = sphi 0, %s78
      %s82 = sphi 0, %s81
      %s98 = sphi 0, %s82
      %s104 = sphi 0, %s106
      %s107 = sphi 0, %s104
      %s108 = sphi 0, %s107
      %s124 = sphi 0, %s108
      %s128 = sphi 0, %s128
      %s130 = sphi 0, %s128
      %s131 = sphi 0, %s130
      %s145 = sphi 0, %s131
      %s149 = sphi 0, %s149
      %s151 = sphi 0, %s149
      %s152 = sphi 0, %s151
      %s166 = sphi 0, %s152
      %s170 = sphi 0, %s170
      %s172 = sphi 0, %s170
      %s173 = sphi 0, %s172
      %s187 = sphi 0, %s173
      %s191 = sphi 0, %s191
      %s193 = sphi 0, %s191
      %s194 = sphi 0, %s193
      %s208 = sphi 0, %s194
      %s212 = sphi 0, %s212
      %s214 = sphi 0, %s212
      %s215 = sphi 0, %s214
      %s229 = sphi 0, %s215
      %s233 = sphi 0, %s233
      %s235 = sphi 0, %s233
      %s236 = sphi 0, %s235
      %s250 = sphi 0, %s236
      %s254 = sphi 0, %s254
      %s256 = sphi 0, %s254
      %s257 = sphi 0, %s256
      %s271 = sphi 0, %s257
      %s275 = sphi 0, %s275
      %s277 = sphi 0, %s275
      %s278 = sphi 0, %s277
      %s292 = sphi 0, %s278
      %s300 = sphi 0, %s302
      %s303 = sphi 0, %s300
      %s304 = sphi 0, %s303
      %s320 = sphi 0, %s304
    $region4: #{tpu_custom_call.1} parent=1 // loop_header_branch
      %31 = sbr.rel (%p29) target = $region8
    $region5: #{tpu_custom_call.1} parent=1 // loop_body
      %s33 = ssub.s32 %s28, 1
      %s34 = ssub.s32 %s28, 2
      %s41 = sadd.s32 1, %s36
      %p42 = scmp.ge.s32.totalorder %s41, 1
      %s43 = scalar_select %p42, 0, %s41
      %s44 = sadd.s32 1, %s35
      %s45 = scalar_select %p42, %s44, %s35
      %p46 = scmp.ge.s32.totalorder %s45, 2
      %s47 = scalar_select %p46, 0, %s45
      %s48 = ssub.s32 %s35, %s47
      %s49 = ssub.s32 %s36, %s43
      %s50 = sor.u32 %s48, %s49
      %p51 = scmp.eq.s32.totalorder %s50, 0
      %s53 = sadd.s32 %s52, 1
      %s54 = scalar_select %p51, %s52, %s53
      %p57 = pneg %p51
      %p58 = scmp.eq.s32.totalorder %s28, 1
      %p59 = por %p57, %p58
      %p60 = scmp.ne.s32.totalorder %s52, %s55
      %p61 = scmp.eq.s32.totalorder %s28, 0
      %p62 = por %p60, %p61
      %p63 = scmp.ne.s32.totalorder %s52, %s55
      %p64 = scmp.eq.s32.totalorder %s33, 1
      %p65 = por %p63, %p64
      %p66 = scmp.ne.s32.totalorder %s55, %s56
      %p67 = scmp.eq.s32.totalorder %s33, 0
      %p68 = por %p66, %p67
      %p69 = scmp.ne.s32.totalorder %s55, %s56
      %p70 = scmp.eq.s32.totalorder %s34, 1
      %p71 = por %p69, %p70
      %p73 = scmp.ne.s32.totalorder %s56, %s72
      %p74 = scmp.eq.s32.totalorder %s34, 0
      %p75 = por %p73, %p74
      %s76 = ssub.s32 %s35, %s47
      %p77 = scmp.eq.s32.totalorder %s76, 0
      %s79 = sadd.s32 %s78, 1
      %s80 = scalar_select %p77, %s78, %s79
      %p83 = pneg %p77
      %p84 = scmp.eq.s32.totalorder %s28, 1
      %p85 = por %p83, %p84
      %p86 = scmp.ne.s32.totalorder %s78, %s81
      %p87 = scmp.eq.s32.totalorder %s28, 0
      %p88 = por %p86, %p87
      %p89 = scmp.ne.s32.totalorder %s78, %s81
      %p90 = scmp.eq.s32.totalorder %s33, 1
      %p91 = por %p89, %p90
      %p92 = scmp.ne.s32.totalorder %s81, %s82
      %p93 = scmp.eq.s32.totalorder %s33, 0
      %p94 = por %p92, %p93
      %p95 = scmp.ne.s32.totalorder %s81, %s82
      %p96 = scmp.eq.s32.totalorder %s34, 1
      %p97 = por %p95, %p96
      %p99 = scmp.ne.s32.totalorder %s82, %s98
      %p100 = scmp.eq.s32.totalorder %s34, 0
      %p101 = por %p99, %p100
      %s102 = ssub.s32 %s35, %s47
      %p103 = scmp.eq.s32.totalorder %s102, 0
      %s105 = sadd.s32 %s104, 1
      %s106 = scalar_select %p103, %s104, %s105
      %p109 = pneg %p103
      %p110 = scmp.eq.s32.totalorder %s28, 1
      %p111 = por %p109, %p110
      %p112 = scmp.ne.s32.totalorder %s104, %s107
      %p113 = scmp.eq.s32.totalorder %s28, 0
      %p114 = por %p112, %p113
      %p115 = scmp.ne.s32.totalorder %s104, %s107
      %p116 = scmp.eq.s32.totalorder %s33, 1
      %p117 = por %p115, %p116
      %p118 = scmp.ne.s32.totalorder %s107, %s108
      %p119 = scmp.eq.s32.totalorder %s33, 0
      %p120 = por %p118, %p119
      %p121 = scmp.ne.s32.totalorder %s107, %s108
      %p122 = scmp.eq.s32.totalorder %s34, 1
      %p123 = por %p121, %p122
      %p125 = scmp.ne.s32.totalorder %s108, %s124
      %p126 = scmp.eq.s32.totalorder %s34, 0
      %p127 = por %p125, %p126
      %s129 = sadd.s32 %s128, 1
      %p132 = scmp.eq.s32.totalorder %s28, 1
      %p133 = scmp.ne.s32.totalorder %s128, %s130
      %p134 = scmp.eq.s32.totalorder %s28, 0
      %p135 = por %p133, %p134
      %p136 = scmp.ne.s32.totalorder %s128, %s130
      %p137 = scmp.eq.s32.totalorder %s33, 1
      %p138 = por %p136, %p137
      %p139 = scmp.ne.s32.totalorder %s130, %s131
      %p140 = scmp.eq.s32.totalorder %s33, 0
      %p141 = por %p139, %p140
      %p142 = scmp.ne.s32.totalorder %s130, %s131
      %p143 = scmp.eq.s32.totalorder %s34, 1
      %p144 = por %p142, %p143
      %p146 = scmp.ne.s32.totalorder %s131, %s145
      %p147 = scmp.eq.s32.totalorder %s34, 0
      %p148 = por %p146, %p147
      %s150 = sadd.s32 %s149, 1
      %p153 = scmp.eq.s32.totalorder %s28, 1
      %p154 = scmp.ne.s32.totalorder %s149, %s151
      %p155 = scmp.eq.s32.totalorder %s28, 0
      %p156 = por %p154, %p155
      %p157 = scmp.ne.s32.totalorder %s149, %s151
      %p158 = scmp.eq.s32.totalorder %s33, 1
      %p159 = por %p157, %p158
      %p160 = scmp.ne.s32.totalorder %s151, %s152
      %p161 = scmp.eq.s32.totalorder %s33, 0
      %p162 = por %p160, %p161
      %p163 = scmp.ne.s32.totalorder %s151, %s152
      %p164 = scmp.eq.s32.totalorder %s34, 1
      %p165 = por %p163, %p164
      %p167 = scmp.ne.s32.totalorder %s152, %s166
      %p168 = scmp.eq.s32.totalorder %s34, 0
      %p169 = por %p167, %p168
      %s171 = sadd.s32 %s170, 1
      %p174 = scmp.eq.s32.totalorder %s28, 1
      %p175 = scmp.ne.s32.totalorder %s170, %s172
      %p176 = scmp.eq.s32.totalorder %s28, 0
      %p177 = por %p175, %p176
      %p178 = scmp.ne.s32.totalorder %s170, %s172
      %p179 = scmp.eq.s32.totalorder %s33, 1
      %p180 = por %p178, %p179
      %p181 = scmp.ne.s32.totalorder %s172, %s173
      %p182 = scmp.eq.s32.totalorder %s33, 0
      %p183 = por %p181, %p182
      %p184 = scmp.ne.s32.totalorder %s172, %s173
      %p185 = scmp.eq.s32.totalorder %s34, 1
      %p186 = por %p184, %p185
      %p188 = scmp.ne.s32.totalorder %s173, %s187
      %p189 = scmp.eq.s32.totalorder %s34, 0
      %p190 = por %p188, %p189
      %s192 = sadd.s32 %s191, 1
      %p195 = scmp.eq.s32.totalorder %s28, 1
      %p196 = scmp.ne.s32.totalorder %s191, %s193
      %p197 = scmp.eq.s32.totalorder %s28, 0
      %p198 = por %p196, %p197
      %p199 = scmp.ne.s32.totalorder %s191, %s193
      %p200 = scmp.eq.s32.totalorder %s33, 1
      %p201 = por %p199, %p200
      %p202 = scmp.ne.s32.totalorder %s193, %s194
      %p203 = scmp.eq.s32.totalorder %s33, 0
      %p204 = por %p202, %p203
      %p205 = scmp.ne.s32.totalorder %s193, %s194
      %p206 = scmp.eq.s32.totalorder %s34, 1
      %p207 = por %p205, %p206
      %p209 = scmp.ne.s32.totalorder %s194, %s208
      %p210 = scmp.eq.s32.totalorder %s34, 0
      %p211 = por %p209, %p210
      %s213 = sadd.s32 %s212, 1
      %p216 = scmp.eq.s32.totalorder %s28, 1
      %p217 = scmp.ne.s32.totalorder %s212, %s214
      %p218 = scmp.eq.s32.totalorder %s28, 0
      %p219 = por %p217, %p218
      %p220 = scmp.ne.s32.totalorder %s212, %s214
      %p221 = scmp.eq.s32.totalorder %s33, 1
      %p222 = por %p220, %p221
      %p223 = scmp.ne.s32.totalorder %s214, %s215
      %p224 = scmp.eq.s32.totalorder %s33, 0
      %p225 = por %p223, %p224
      %p226 = scmp.ne.s32.totalorder %s214, %s215
      %p227 = scmp.eq.s32.totalorder %s34, 1
      %p228 = por %p226, %p227
      %p230 = scmp.ne.s32.totalorder %s215, %s229
      %p231 = scmp.eq.s32.totalorder %s34, 0
      %p232 = por %p230, %p231
      %s234 = sadd.s32 %s233, 1
      %p237 = scmp.eq.s32.totalorder %s28, 1
      %p238 = scmp.ne.s32.totalorder %s233, %s235
      %p239 = scmp.eq.s32.totalorder %s28, 0
      %p240 = por %p238, %p239
      %p241 = scmp.ne.s32.totalorder %s233, %s235
      %p242 = scmp.eq.s32.totalorder %s33, 1
      %p243 = por %p241, %p242
      %p244 = scmp.ne.s32.totalorder %s235, %s236
      %p245 = scmp.eq.s32.totalorder %s33, 0
      %p246 = por %p244, %p245
      %p247 = scmp.ne.s32.totalorder %s235, %s236
      %p248 = scmp.eq.s32.totalorder %s34, 1
      %p249 = por %p247, %p248
      %p251 = scmp.ne.s32.totalorder %s236, %s250
      %p252 = scmp.eq.s32.totalorder %s34, 0
      %p253 = por %p251, %p252
      %s255 = sadd.s32 %s254, 1
      %p258 = scmp.eq.s32.totalorder %s28, 1
      %p259 = scmp.ne.s32.totalorder %s254, %s256
      %p260 = scmp.eq.s32.totalorder %s28, 0
      %p261 = por %p259, %p260
      %p262 = scmp.ne.s32.totalorder %s254, %s256
      %p263 = scmp.eq.s32.totalorder %s33, 1
      %p264 = por %p262, %p263
      %p265 = scmp.ne.s32.totalorder %s256, %s257
      %p266 = scmp.eq.s32.totalorder %s33, 0
      %p267 = por %p265, %p266
      %p268 = scmp.ne.s32.totalorder %s256, %s257
      %p269 = scmp.eq.s32.totalorder %s34, 1
      %p270 = por %p268, %p269
      %p272 = scmp.ne.s32.totalorder %s257, %s271
      %p273 = scmp.eq.s32.totalorder %s34, 0
      %p274 = por %p272, %p273
      %s276 = sadd.s32 %s275, 1
      %p279 = scmp.eq.s32.totalorder %s28, 1
      %p280 = scmp.ne.s32.totalorder %s275, %s277
      %p281 = scmp.eq.s32.totalorder %s28, 0
      %p282 = por %p280, %p281
      %p283 = scmp.ne.s32.totalorder %s275, %s277
      %p284 = scmp.eq.s32.totalorder %s33, 1
      %p285 = por %p283, %p284
      %p286 = scmp.ne.s32.totalorder %s277, %s278
      %p287 = scmp.eq.s32.totalorder %s33, 0
      %p288 = por %p286, %p287
      %p289 = scmp.ne.s32.totalorder %s277, %s278
      %p290 = scmp.eq.s32.totalorder %s34, 1
      %p291 = por %p289, %p290
      %p293 = scmp.ne.s32.totalorder %s278, %s292
      %p294 = scmp.eq.s32.totalorder %s34, 0
      %p295 = por %p293, %p294
      %s296 = ssub.s32 %s35, %s47
      %s297 = ssub.s32 %s36, %s43
      %s298 = sor.u32 %s296, %s297
      %p299 = scmp.eq.s32.totalorder %s298, 0
      %s301 = sadd.s32 %s300, 1
      %s302 = scalar_select %p299, %s300, %s301
      %p305 = pneg %p299
      %p306 = scmp.eq.s32.totalorder %s28, 1
      %p307 = por %p305, %p306
      %p308 = scmp.ne.s32.totalorder %s300, %s303
      %p309 = scmp.eq.s32.totalorder %s28, 0
      %p310 = por %p308, %p309
      %p311 = scmp.ne.s32.totalorder %s300, %s303
      %p312 = scmp.eq.s32.totalorder %s33, 1
      %p313 = por %p311, %p312
      %p314 = scmp.ne.s32.totalorder %s303, %s304
      %p315 = scmp.eq.s32.totalorder %s33, 0
      %p316 = por %p314, %p315
      %p317 = scmp.ne.s32.totalorder %s303, %s304
      %p318 = scmp.eq.s32.totalorder %s34, 1
      %p319 = por %p317, %p318
      %p321 = scmp.ne.s32.totalorder %s304, %s320
      %p322 = scmp.eq.s32.totalorder %s34, 0
      %p323 = por %p321, %p322
      %p324 = scmp.le.s32.totalorder 1, %s28
      %p325 = scmp.lt.s32.totalorder %s28, 3
      %p326 = pnand %p324, %p325
      %p327 = pneg %p326
      // Predicated region
      $region9: #{tpu_custom_call.1} parent=5 // pred_check
        _
      $region10: #{tpu_custom_call.1} parent=5 // pred_check_branch
        %329 = sbr.rel (%p326) target = $region12
      $region11: #{tpu_custom_call.1} parent=5 // pred_region
        %s330 = ssub.s32 %s28, 1
        // Predicated region
        $region13: #{tpu_custom_call.1} parent=11 // pred_check
          %p331 = pneg %p141
        $region14: #{tpu_custom_call.1} parent=11 // pred_check_branch
          %333 = sbr.rel (%p331) target = $region16
        $region15: #{tpu_custom_call.1} parent=11 // pred_region
          %s335 = ssub.s32 512, 512
          %336 = vsyncadd [#allocation11], %s335
          %s337 = sshll.u32 [#allocation10], 4
          %s338 = int_to_ptr.vmem [resolvable:$true] %s337
          %343 = dma.hbm_to_vmem [thread:$0]  %s3, 512, %s338, [#allocation11], 128, 128, 8
        $region16: #{tpu_custom_call.1} parent=11 // pred_fallthru
          _
        // Predicated region
        $region17: #{tpu_custom_call.1} parent=11 // pred_check
          %p344 = pneg %p162
        $region18: #{tpu_custom_call.1} parent=11 // pred_check_branch
          %346 = sbr.rel (%p344) target = $region20
        $region19: #{tpu_custom_call.1} parent=11 // pred_region
          _
        $region20: #{tpu_custom_call.1} parent=11 // pred_fallthru
          _
        // Predicated region
        $region21: #{tpu_custom_call.1} parent=11 // pred_check
          %p347 = pneg %p183
        $region22: #{tpu_custom_call.1} parent=11 // pred_check_branch
          %349 = sbr.rel (%p347) target = $region24
        $region23: #{tpu_custom_call.1} parent=11 // pred_region
          %s351 = ssub.s32 512, 512
          %352 = vsyncadd [#allocation11], %s351
          %s353 = sshll.u32 [#allocation12], 4
          %s354 = int_to_ptr.vmem [resolvable:$true] %s353
          %359 = dma.hbm_to_vmem [thread:$0]  %s5, 512, %s354, [#allocation11], 128, 128, 8
        $region24: #{tpu_custom_call.1} parent=11 // pred_fallthru
          _
        // Predicated region
        $region25: #{tpu_custom_call.1} parent=11 // pred_check
          %p360 = pneg %p204
        $region26: #{tpu_custom_call.1} parent=11 // pred_check_branch
          %362 = sbr.rel (%p360) target = $region28
        $region27: #{tpu_custom_call.1} parent=11 // pred_region
          _
        $region28: #{tpu_custom_call.1} parent=11 // pred_fallthru
          _
        // Predicated region
        $region29: #{tpu_custom_call.1} parent=11 // pred_check
          %p363 = pneg %p225
        $region30: #{tpu_custom_call.1} parent=11 // pred_check_branch
          %365 = sbr.rel (%p363) target = $region32
        $region31: #{tpu_custom_call.1} parent=11 // pred_region
          %s367 = ssub.s32 512, 512
          %368 = vsyncadd [#allocation14], %s367
          %s369 = sshll.u32 [#allocation13], 4
          %s370 = int_to_ptr.vmem [resolvable:$true] %s369
          %375 = dma.hbm_to_vmem [thread:$0]  %s7, 512, %s370, [#allocation14], 128, 128, 8
        $region32: #{tpu_custom_call.1} parent=11 // pred_fallthru
          _
        // Predicated region
        $region33: #{tpu_custom_call.1} parent=11 // pred_check
          %p376 = pneg %p246
        $region34: #{tpu_custom_call.1} parent=11 // pred_check_branch
          %378 = sbr.rel (%p376) target = $region36
        $region35: #{tpu_custom_call.1} parent=11 // pred_region
          _
        $region36: #{tpu_custom_call.1} parent=11 // pred_fallthru
          _
        // Predicated region
        $region37: #{tpu_custom_call.1} parent=11 // pred_check
          %p379 = pneg %p267
        $region38: #{tpu_custom_call.1} parent=11 // pred_check_branch
          %381 = sbr.rel (%p379) target = $region40
        $region39: #{tpu_custom_call.1} parent=11 // pred_region
          %s383 = ssub.s32 512, 512
          %384 = vsyncadd [#allocation14], %s383
          %s385 = sshll.u32 [#allocation15], 4
          %s386 = int_to_ptr.vmem [resolvable:$true] %s385
          %391 = dma.hbm_to_vmem [thread:$0]  %s9, 512, %s386, [#allocation14], 128, 128, 8
        $region40: #{tpu_custom_call.1} parent=11 // pred_fallthru
          _
        // Predicated region
        $region41: #{tpu_custom_call.1} parent=11 // pred_check
          %p392 = pneg %p288
        $region42: #{tpu_custom_call.1} parent=11 // pred_check_branch
          %394 = sbr.rel (%p392) target = $region44
        $region43: #{tpu_custom_call.1} parent=11 // pred_region
          _
        $region44: #{tpu_custom_call.1} parent=11 // pred_fallthru
          _
      $region12: #{tpu_custom_call.1} parent=5 // pred_fallthru
        _
      %p395 = scmp.lt.s32.totalorder %s28, 2
      // Predicated region
      $region45: #{tpu_custom_call.1} parent=5 // pred_check
        %p396 = pneg %p395
      $region46: #{tpu_custom_call.1} parent=5 // pred_check_branch
        %398 = sbr.rel (%p396) target = $region48
      $region47: #{tpu_custom_call.1} parent=5 // pred_region
        // Predicated region
        $region49: #{tpu_custom_call.1} parent=47 // pred_check
          %p399 = pneg %p62
        $region50: #{tpu_custom_call.1} parent=47 // pred_check_branch
          %401 = sbr.rel (%p399) target = $region52
        $region51: #{tpu_custom_call.1} parent=47 // pred_region
          %s402 = sand.u32 %s52, 1
          %s403 = scalar_lea.sflag [#allocation5], %s402
          %s404 = sand.u32 %s52, 1
          %s405 = smul.addr %s404, 8
          %s406 = scalar_lea.vmem [#allocation4], %s405
          %s408 = ssub.s32 128, 128
          %409 = vsyncadd %s403, %s408
          %s410 = sadd.s32 %s36, %s35
          %s411 = smul.addr %s410, 128
          %s412 = scalar_lea.hbm %s0, %s411
          %s414 = sshll.u32 %s406, 4
          %s415 = int_to_ptr.vmem [resolvable:$true] %s414
          %417 = dma.hbm_to_vmem [thread:$0]  %s412, 128, %s415, %s403
        $region52: #{tpu_custom_call.1} parent=47 // pred_fallthru
          _
        // Predicated region
        $region53: #{tpu_custom_call.1} parent=47 // pred_check
          %p418 = pneg %p88
        $region54: #{tpu_custom_call.1} parent=47 // pred_check_branch
          %420 = sbr.rel (%p418) target = $region56
        $region55: #{tpu_custom_call.1} parent=47 // pred_region
          %s421 = sand.u32 %s28, 1
          %s422 = scalar_lea.sflag [#allocation8], %s421
          %s423 = sand.u32 %s78, 1
          %s424 = smul.addr %s423, 8
          %s425 = scalar_lea.vmem [#allocation7], %s424
          %s427 = ssub.s32 128, 128
          %428 = vsyncadd %s422, %s427
          %s429 = smul.addr %s35, 128
          %s430 = scalar_lea.hbm %s1, %s429
          %s432 = sshll.u32 %s425, 4
          %s433 = int_to_ptr.vmem [resolvable:$true] %s432
          %435 = dma.hbm_to_vmem [thread:$0]  %s430, 128, %s433, %s422
        $region56: #{tpu_custom_call.1} parent=47 // pred_fallthru
          _
        // Predicated region
        $region57: #{tpu_custom_call.1} parent=47 // pred_check
          %p436 = pneg %p114
        $region58: #{tpu_custom_call.1} parent=47 // pred_check_branch
          %438 = sbr.rel (%p436) target = $region60
        $region59: #{tpu_custom_call.1} parent=47 // pred_region
          %s439 = sand.u32 %s28, 1
          %s440 = scalar_lea.sflag [#allocation8], %s439
          %s441 = sand.u32 %s104, 1
          %s442 = smul.addr %s441, 8
          %s443 = scalar_lea.vmem [#allocation9], %s442
          %s445 = ssub.s32 128, 128
          %446 = vsyncadd %s440, %s445
          %s447 = smul.addr %s35, 128
          %s448 = scalar_lea.hbm %s2, %s447
          %s450 = sshll.u32 %s443, 4
          %s451 = int_to_ptr.vmem [resolvable:$true] %s450
          %453 = dma.hbm_to_vmem [thread:$0]  %s448, 128, %s451, %s440
        $region60: #{tpu_custom_call.1} parent=47 // pred_fallthru
          _
      $region48: #{tpu_custom_call.1} parent=5 // pred_fallthru
        _
      %p454 = scmp.le.s32.totalorder 1, %s28
      %p455 = scmp.lt.s32.totalorder %s28, 3
      %p456 = pnand %p454, %p455
      %p457 = pneg %p456
      // Predicated region
      $region61: #{tpu_custom_call.1} parent=5 // pred_check
        _
      $region62: #{tpu_custom_call.1} parent=5 // pred_check_branch
        %459 = sbr.rel (%p456) target = $region64
      $region63: #{tpu_custom_call.1} parent=5 // pred_region
        %s460 = ssub.s32 %s28, 1
        %s461 = sand.u32 %s55, 1
        %s462 = scalar_lea.sflag [#allocation5], %s461
        %s463 = sand.u32 %s55, 1
        %s464 = smul.addr %s463, 8
        %s465 = scalar_lea.vmem [#allocation4], %s464
        // Predicated region
        $region65: #{tpu_custom_call.1} parent=63 // pred_check
          %p466 = pneg %p68
        $region66: #{tpu_custom_call.1} parent=63 // pred_check_branch
          %468 = sbr.rel (%p466) target = $region68
        $region67: #{tpu_custom_call.1} parent=63 // pred_region
          %469 = dma.done %s462, 128
        $region68: #{tpu_custom_call.1} parent=63 // pred_fallthru
          _
        %s470 = sand.u32 %s33, 1
        %s471 = scalar_lea.sflag [#allocation8], %s470
        %s472 = sand.u32 %s81, 1
        %s473 = smul.addr %s472, 8
        %s474 = scalar_lea.vmem [#allocation7], %s473
        // Predicated region
        $region69: #{tpu_custom_call.1} parent=63 // pred_check
          %p475 = pneg %p94
        $region70: #{tpu_custom_call.1} parent=63 // pred_check_branch
          %477 = sbr.rel (%p475) target = $region72
        $region71: #{tpu_custom_call.1} parent=63 // pred_region
          %478 = dma.done %s471, 128
        $region72: #{tpu_custom_call.1} parent=63 // pred_fallthru
          _
        %s479 = sand.u32 %s33, 1
        %s480 = scalar_lea.sflag [#allocation8], %s479
        %s481 = sand.u32 %s107, 1
        %s482 = smul.addr %s481, 8
        %s483 = scalar_lea.vmem [#allocation9], %s482
        // Predicated region
        $region73: #{tpu_custom_call.1} parent=63 // pred_check
          %p484 = pneg %p120
        $region74: #{tpu_custom_call.1} parent=63 // pred_check_branch
          %486 = sbr.rel (%p484) target = $region76
        $region75: #{tpu_custom_call.1} parent=63 // pred_region
          %487 = dma.done %s480, 128
        $region76: #{tpu_custom_call.1} parent=63 // pred_fallthru
          _
        // Predicated region
        $region77: #{tpu_custom_call.1} parent=63 // pred_check
          %p488 = pneg %p141
        $region78: #{tpu_custom_call.1} parent=63 // pred_check_branch
          %490 = sbr.rel (%p488) target = $region80
        $region79: #{tpu_custom_call.1} parent=63 // pred_region
          %491 = dma.done [#allocation11], 512
        $region80: #{tpu_custom_call.1} parent=63 // pred_fallthru
          _
        // Predicated region
        $region81: #{tpu_custom_call.1} parent=63 // pred_check
          %p492 = pneg %p183
        $region82: #{tpu_custom_call.1} parent=63 // pred_check_branch
          %494 = sbr.rel (%p492) target = $region84
        $region83: #{tpu_custom_call.1} parent=63 // pred_region
          %495 = dma.done [#allocation11], 512
        $region84: #{tpu_custom_call.1} parent=63 // pred_fallthru
          _
        // Predicated region
        $region85: #{tpu_custom_call.1} parent=63 // pred_check
          %p496 = pneg %p225
        $region86: #{tpu_custom_call.1} parent=63 // pred_check_branch
          %498 = sbr.rel (%p496) target = $region88
        $region87: #{tpu_custom_call.1} parent=63 // pred_region
          %499 = dma.done [#allocation14], 512
        $region88: #{tpu_custom_call.1} parent=63 // pred_fallthru
          _
        // Predicated region
        $region89: #{tpu_custom_call.1} parent=63 // pred_check
          %p500 = pneg %p267
        $region90: #{tpu_custom_call.1} parent=63 // pred_check_branch
          %502 = sbr.rel (%p500) target = $region92
        $region91: #{tpu_custom_call.1} parent=63 // pred_region
          %503 = dma.done [#allocation14], 512
        $region92: #{tpu_custom_call.1} parent=63 // pred_fallthru
          _
        %s504 = sand.u32 %s55, 1
        %s505 = scalar_lea.sflag [#allocation5], %s504
        %s506 = sand.u32 %s55, 1
        %s507 = smul.addr %s506, 8
        %s508 = scalar_lea.vmem [#allocation4], %s507
        %p509 = pneg %p68
        %p510 = pneg %p65
        %s511 = sand.u32 %s33, 1
        %s512 = scalar_lea.sflag [#allocation8], %s511
        %s513 = sand.u32 %s81, 1
        %s514 = smul.addr %s513, 8
        %s515 = scalar_lea.vmem [#allocation7], %s514
        %p516 = pneg %p94
        %p517 = pneg %p91
        %s518 = sand.u32 %s33, 1
        %s519 = scalar_lea.sflag [#allocation8], %s518
        %s520 = sand.u32 %s107, 1
        %s521 = smul.addr %s520, 8
        %s522 = scalar_lea.vmem [#allocation9], %s521
        %p523 = pneg %p120
        %p524 = pneg %p117
        %p525 = pneg %p141
        %p526 = pneg %p138
        %p527 = pneg %p162
        %p528 = pneg %p159
        %p529 = pneg %p183
        %p530 = pneg %p180
        %p531 = pneg %p204
        %p532 = pneg %p201
        %p533 = pneg %p225
        %p534 = pneg %p222
        %p535 = pneg %p246
        %p536 = pneg %p243
        %p537 = pneg %p267
        %p538 = pneg %p264
        %p539 = pneg %p288
        %p540 = pneg %p285
        %p541 = pneg %p316
        %p542 = pneg %p313
        %s543 = sand.u32 %s303, 1
        %s544 = scalar_lea.sflag [#allocation6], %s543
        %s545 = sand.u32 %s303, 1
        %s546 = smul.addr %s545, 8
        %s547 = scalar_lea.vmem [#allocation16], %s546
        %p548 = scmp.eq.s32.totalorder %s38, 0
        // Predicated region
        $region93: #{tpu_custom_call.1} parent=63 // pred_check
          %p549 = pneg %p548
        $region94: #{tpu_custom_call.1} parent=63 // pred_check_branch
          %551 = sbr.rel (%p549) target = $region96
        $region95: #{tpu_custom_call.1} parent=63 // pred_region
          %v552 = vld [vmem:[%s474] sm:$0xff]
          %v553 = vld [vmem:[%s483] sm:$0xff]
          %v554 = vld [vmem:[#allocation12] sm:$0xff]
          %v555 = vld [vmem:[#allocation12 + $0x8] sm:$0xff]
          %v556 = vld [vmem:[#allocation12 + $0x10] sm:$0xff]
          %v557 = vld [vmem:[#allocation12 + $0x18] sm:$0xff]
          %v558 = vld [vmem:[%s6] sm:$0x1]
          %v560 = vlaneseq
          %v561 = vshrl.u32 %v560, 7
          %v562 = vsub.s32 0, %v561
          %v563 = vrot.slane %v558, %v562
          %vm565 = vcmask 261120
          %v567 = vsel %vm565, %v552, 0
          %569 = vmatprep.subr.mxu0 0.0
          %570 = vmatpush1.msra.mxu0 0.0
          %571 = vmatprep.subr.mxu0 0.0
          %572 = vmatpush1.msra.mxu0 0.0
          %573 = vmatprep.subr.mxu0 0.0
          %574 = vmatpush1.msra.mxu0 0.0
          %575 = vmatprep.subr.mxu0 0.0
          %576 = vmatpush1.msra.mxu0 0.0
          %577 = vmatprep.subr.mxu0 0.0
          %578 = vmatpush1.msra.mxu0 0.0
          %579 = vmatprep.subr.mxu0 0.0
          %580 = vmatpush1.msra.mxu0 0.0
          %581 = vmatprep.subr.mxu0 0.0
          %582 = vmatpush1.msra.mxu0 0.0
          %583 = vmatprep.subr.mxu0 0.0
          %584 = vmatpush1.msra.mxu0 0.0
          %585 = vmatprep.subr.mxu0 0.0
          %586 = vmatpush1.msra.mxu0 0.0
          %587 = vmatprep.subr.mxu0 0.0
          %588 = vmatpush1.msra.mxu0 0.0
          %589 = vmatprep.subr.mxu0 0.0
          %590 = vmatpush1.msra.mxu0 0.0
          %591 = vmatprep.subr.mxu0 0.0
          %592 = vmatpush1.msra.mxu0 0.0
          %593 = vmatprep.subr.mxu0 0.0
          %594 = vmatpush1.msra.mxu0 %v557
          %595 = vmatprep.subr.mxu0 0.0
          %596 = vmatpush1.msra.mxu0 %v556
          %597 = vmatprep.subr.mxu0 0.0
          %598 = vmatpush1.msra.mxu0 %v555
          %599 = vmatprep.subr.mxu0 0.0
          %600 = vmatpush1.msra.mxu0 %v554
          %601 = vmatprep.subr.mxu0 0.0
          %602 = vmatpush2.msra.mxu0 0.0
          %603 = vmatprep.subr.mxu0 0.0
          %604 = vmatpush2.msra.mxu0 0.0
          %605 = vmatprep.subr.mxu0 0.0
          %606 = vmatpush2.msra.mxu0 0.0
          %607 = vmatprep.subr.mxu0 0.0
          %608 = vmatpush2.msra.mxu0 0.0
          %609 = vmatprep.subr.mxu0 0.0
          %610 = vmatpush2.msra.mxu0 0.0
          %611 = vmatprep.subr.mxu0 0.0
          %612 = vmatpush2.msra.mxu0 0.0
          %613 = vmatprep.subr.mxu0 0.0
          %614 = vmatpush2.msra.mxu0 0.0
          %615 = vmatprep.subr.mxu0 0.0
          %616 = vmatpush2.msra.mxu0 0.0
          %617 = vmatprep.subr.mxu0 0.0
          %618 = vmatpush2.msra.mxu0 0.0
          %619 = vmatprep.subr.mxu0 0.0
          %620 = vmatpush2.msra.mxu0 0.0
          %621 = vmatprep.subr.mxu0 0.0
          %622 = vmatpush2.msra.mxu0 0.0
          %623 = vmatprep.subr.mxu0 0.0
          %624 = vmatpush2.msra.mxu0 0.0
          %625 = vmatprep.subr.mxu0 0.0
          %626 = vmatpush2.msra.mxu0 0.0
          %627 = vmatprep.subr.mxu0 0.0
          %628 = vmatpush2.msra.mxu0 0.0
          %629 = vmatprep.subr.mxu0 0.0
          %630 = vmatpush2.msra.mxu0 0.0
          %631 = vmatprep.subr.mxu0 0.0
          %632 = vmatpush2.msra.mxu0 0.0
          %633 = vmatprep.mubr.f32.mxu0 0.0
          %634 = vmatmul.mubr.f32.gmra.mxu0 %v567
          %v635 = vpop.f32.mrf.mxu0
          %v636 = vadd.f32 %v563, %v635
          %v637 = vpop.f32.mrf.mxu0
          %638 = vdwg.mxu0
          %v639 = vld [vmem:[#allocation13] sm:$0xff]
          %v640 = vld [vmem:[#allocation13 + $0x8] sm:$0xff]
          %v641 = vld [vmem:[#allocation13 + $0x10] sm:$0xff]
          %v642 = vld [vmem:[#allocation13 + $0x18] sm:$0xff]
          %v643 = vld [vmem:[%s8] sm:$0x1]
          %v645 = vlaneseq
          %v646 = vshrl.u32 %v645, 7
          %v647 = vsub.s32 0, %v646
          %v648 = vrot.slane %v643, %v647
          %v651 = vsel %vm565, %v553, 0
          %653 = vmatprep.subr.mxu0 0.0
          %654 = vmatpush1.msra.mxu0 0.0
          %655 = vmatprep.subr.mxu0 0.0
          %656 = vmatpush1.msra.mxu0 0.0
          %657 = vmatprep.subr.mxu0 0.0
          %658 = vmatpush1.msra.mxu0 0.0
          %659 = vmatprep.subr.mxu0 0.0
          %660 = vmatpush1.msra.mxu0 0.0
          %661 = vmatprep.subr.mxu0 0.0
          %662 = vmatpush1.msra.mxu0 0.0
          %663 = vmatprep.subr.mxu0 0.0
          %664 = vmatpush1.msra.mxu0 0.0
          %665 = vmatprep.subr.mxu0 0.0
          %666 = vmatpush1.msra.mxu0 0.0
          %667 = vmatprep.subr.mxu0 0.0
          %668 = vmatpush1.msra.mxu0 0.0
          %669 = vmatprep.subr.mxu0 0.0
          %670 = vmatpush1.msra.mxu0 0.0
          %671 = vmatprep.subr.mxu0 0.0
          %672 = vmatpush1.msra.mxu0 0.0
          %673 = vmatprep.subr.mxu0 0.0
          %674 = vmatpush1.msra.mxu0 0.0
          %675 = vmatprep.subr.mxu0 0.0
          %676 = vmatpush1.msra.mxu0 0.0
          %677 = vmatprep.subr.mxu0 0.0
          %678 = vmatpush1.msra.mxu0 %v642
          %679 = vmatprep.subr.mxu0 0.0
          %680 = vmatpush1.msra.mxu0 %v641
          %681 = vmatprep.subr.mxu0 0.0
          %682 = vmatpush1.msra.mxu0 %v640
          %683 = vmatprep.subr.mxu0 0.0
          %684 = vmatpush1.msra.mxu0 %v639
          %685 = vmatprep.subr.mxu0 0.0
          %686 = vmatpush2.msra.mxu0 0.0
          %687 = vmatprep.subr.mxu0 0.0
          %688 = vmatpush2.msra.mxu0 0.0
          %689 = vmatprep.subr.mxu0 0.0
          %690 = vmatpush2.msra.mxu0 0.0
          %691 = vmatprep.subr.mxu0 0.0
          %692 = vmatpush2.msra.mxu0 0.0
          %693 = vmatprep.subr.mxu0 0.0
          %694 = vmatpush2.msra.mxu0 0.0
          %695 = vmatprep.subr.mxu0 0.0
          %696 = vmatpush2.msra.mxu0 0.0
          %697 = vmatprep.subr.mxu0 0.0
          %698 = vmatpush2.msra.mxu0 0.0
          %699 = vmatprep.subr.mxu0 0.0
          %700 = vmatpush2.msra.mxu0 0.0
          %701 = vmatprep.subr.mxu0 0.0
          %702 = vmatpush2.msra.mxu0 0.0
          %703 = vmatprep.subr.mxu0 0.0
          %704 = vmatpush2.msra.mxu0 0.0
          %705 = vmatprep.subr.mxu0 0.0
          %706 = vmatpush2.msra.mxu0 0.0
          %707 = vmatprep.subr.mxu0 0.0
          %708 = vmatpush2.msra.mxu0 0.0
          %709 = vmatprep.subr.mxu0 0.0
          %710 = vmatpush2.msra.mxu0 0.0
          %711 = vmatprep.subr.mxu0 0.0
          %712 = vmatpush2.msra.mxu0 0.0
          %713 = vmatprep.subr.mxu0 0.0
          %714 = vmatpush2.msra.mxu0 0.0
          %715 = vmatprep.subr.mxu0 0.0
          %716 = vmatpush2.msra.mxu0 0.0
          %717 = vmatprep.mubr.f32.mxu0 0.0
          %718 = vmatmul.mubr.f32.gmra.mxu0 %v651
          %v719 = vpop.f32.mrf.mxu0
          %v720 = vadd.f32 %v648, %v719
          %v721 = vpop.f32.mrf.mxu0
          %722 = vdwg.mxu0
          %723 = vst.msk [vmem:[#allocation2] sm:$0xff] %vm565, %v636
          %724 = vst.msk [vmem:[#allocation3] sm:$0xff] %vm565, %v720
        $region96: #{tpu_custom_call.1} parent=63 // pred_fallthru
          _
        %v725 = vld [vmem:[%s465] sm:$0xff]
        %v726 = vld [vmem:[#allocation10] sm:$0xff]
        %v727 = vld [vmem:[#allocation10 + $0x8] sm:$0xff]
        %v728 = vld [vmem:[#allocation10 + $0x10] sm:$0xff]
        %v729 = vld [vmem:[#allocation10 + $0x18] sm:$0xff]
        %v730 = vld [vmem:[%s4] sm:$0x1]
        %v732 = vlaneseq
        %v733 = vshrl.u32 %v732, 7
        %v734 = vsub.s32 0, %v733
        %v735 = vrot.slane %v730, %v734
        %vm737 = vcmask 261120
        %v739 = vsel %vm737, %v725, 0
        %741 = vmatprep.subr.mxu0 0.0
        %742 = vmatpush1.msra.mxu0 0.0
        %743 = vmatprep.subr.mxu0 0.0
        %744 = vmatpush1.msra.mxu0 0.0
        %745 = vmatprep.subr.mxu0 0.0
        %746 = vmatpush1.msra.mxu0 0.0
        %747 = vmatprep.subr.mxu0 0.0
        %748 = vmatpush1.msra.mxu0 0.0
        %749 = vmatprep.subr.mxu0 0.0
        %750 = vmatpush1.msra.mxu0 0.0
        %751 = vmatprep.subr.mxu0 0.0
        %752 = vmatpush1.msra.mxu0 0.0
        %753 = vmatprep.subr.mxu0 0.0
        %754 = vmatpush1.msra.mxu0 0.0
        %755 = vmatprep.subr.mxu0 0.0
        %756 = vmatpush1.msra.mxu0 0.0
        %757 = vmatprep.subr.mxu0 0.0
        %758 = vmatpush1.msra.mxu0 0.0
        %759 = vmatprep.subr.mxu0 0.0
        %760 = vmatpush1.msra.mxu0 0.0
        %761 = vmatprep.subr.mxu0 0.0
        %762 = vmatpush1.msra.mxu0 0.0
        %763 = vmatprep.subr.mxu0 0.0
        %764 = vmatpush1.msra.mxu0 0.0
        %765 = vmatprep.subr.mxu0 0.0
        %766 = vmatpush1.msra.mxu0 %v729
        %767 = vmatprep.subr.mxu0 0.0
        %768 = vmatpush1.msra.mxu0 %v728
        %769 = vmatprep.subr.mxu0 0.0
        %770 = vmatpush1.msra.mxu0 %v727
        %771 = vmatprep.subr.mxu0 0.0
        %772 = vmatpush1.msra.mxu0 %v726
        %773 = vmatprep.subr.mxu0 0.0
        %774 = vmatpush2.msra.mxu0 0.0
        %775 = vmatprep.subr.mxu0 0.0
        %776 = vmatpush2.msra.mxu0 0.0
        %777 = vmatprep.subr.mxu0 0.0
        %778 = vmatpush2.msra.mxu0 0.0
        %779 = vmatprep.subr.mxu0 0.0
        %780 = vmatpush2.msra.mxu0 0.0
        %781 = vmatprep.subr.mxu0 0.0
        %782 = vmatpush2.msra.mxu0 0.0
        %783 = vmatprep.subr.mxu0 0.0
        %784 = vmatpush2.msra.mxu0 0.0
        %785 = vmatprep.subr.mxu0 0.0
        %786 = vmatpush2.msra.mxu0 0.0
        %787 = vmatprep.subr.mxu0 0.0
        %788 = vmatpush2.msra.mxu0 0.0
        %789 = vmatprep.subr.mxu0 0.0
        %790 = vmatpush2.msra.mxu0 0.0
        %791 = vmatprep.subr.mxu0 0.0
        %792 = vmatpush2.msra.mxu0 0.0
        %793 = vmatprep.subr.mxu0 0.0
        %794 = vmatpush2.msra.mxu0 0.0
        %795 = vmatprep.subr.mxu0 0.0
        %796 = vmatpush2.msra.mxu0 0.0
        %797 = vmatprep.subr.mxu0 0.0
        %798 = vmatpush2.msra.mxu0 0.0
        %799 = vmatprep.subr.mxu0 0.0
        %800 = vmatpush2.msra.mxu0 0.0
        %801 = vmatprep.subr.mxu0 0.0
        %802 = vmatpush2.msra.mxu0 0.0
        %803 = vmatprep.subr.mxu0 0.0
        %804 = vmatpush2.msra.mxu0 0.0
        %805 = vmatprep.mubr.f32.mxu0 0.0
        %806 = vmatmul.mubr.f32.gmra.mxu0 %v739
        %v807 = vpop.f32.mrf.mxu0
        %v808 = vadd.f32 %v735, %v807
        %v809 = vpop.f32.mrf.mxu0
        %810 = vdwg.mxu0
        %v811 = vld [vmem:[#allocation2] sm:$0xff]
        %v812 = vld [vmem:[#allocation3] sm:$0xff]
        %vm813 = vcmask 64512
        %v815 = vsel %vm813, %v808, 0
        %v818 = vsel %vm813, %v811, 0
        %820 = vmatprep.subr.mxu0 0.0
        %821 = vmatpush1.xpose.msra.mxu0 0.0
        %822 = vmatprep.subr.mxu0 0.0
        %823 = vmatpush1.xpose.msra.mxu0 0.0
        %824 = vmatprep.subr.mxu0 0.0
        %825 = vmatpush1.xpose.msra.mxu0 0.0
        %826 = vmatprep.subr.mxu0 0.0
        %827 = vmatpush1.xpose.msra.mxu0 0.0
        %828 = vmatprep.subr.mxu0 0.0
        %829 = vmatpush1.xpose.msra.mxu0 0.0
        %830 = vmatprep.subr.mxu0 0.0
        %831 = vmatpush1.xpose.msra.mxu0 0.0
        %832 = vmatprep.subr.mxu0 0.0
        %833 = vmatpush1.xpose.msra.mxu0 0.0
        %834 = vmatprep.subr.mxu0 0.0
        %835 = vmatpush1.xpose.msra.mxu0 0.0
        %836 = vmatprep.subr.mxu0 0.0
        %837 = vmatpush1.xpose.msra.mxu0 0.0
        %838 = vmatprep.subr.mxu0 0.0
        %839 = vmatpush1.xpose.msra.mxu0 0.0
        %840 = vmatprep.subr.mxu0 0.0
        %841 = vmatpush1.xpose.msra.mxu0 0.0
        %842 = vmatprep.subr.mxu0 0.0
        %843 = vmatpush1.xpose.msra.mxu0 0.0
        %844 = vmatprep.subr.mxu0 0.0
        %845 = vmatpush1.xpose.msra.mxu0 0.0
        %846 = vmatprep.subr.mxu0 0.0
        %847 = vmatpush1.xpose.msra.mxu0 0.0
        %848 = vmatprep.subr.mxu0 0.0
        %849 = vmatpush1.xpose.msra.mxu0 0.0
        %850 = vmatprep.subr.mxu0 0.0
        %851 = vmatpush1.xpose.msra.mxu0 %v818
        %852 = vmatprep.subr.mxu0 0.0
        %853 = vmatpush2.xpose.msra.mxu0 0.0
        %854 = vmatprep.subr.mxu0 0.0
        %855 = vmatpush2.xpose.msra.mxu0 0.0
        %856 = vmatprep.subr.mxu0 0.0
        %857 = vmatpush2.xpose.msra.mxu0 0.0
        %858 = vmatprep.subr.mxu0 0.0
        %859 = vmatpush2.xpose.msra.mxu0 0.0
        %860 = vmatprep.subr.mxu0 0.0
        %861 = vmatpush2.xpose.msra.mxu0 0.0
        %862 = vmatprep.subr.mxu0 0.0
        %863 = vmatpush2.xpose.msra.mxu0 0.0
        %864 = vmatprep.subr.mxu0 0.0
        %865 = vmatpush2.xpose.msra.mxu0 0.0
        %866 = vmatprep.subr.mxu0 0.0
        %867 = vmatpush2.xpose.msra.mxu0 0.0
        %868 = vmatprep.subr.mxu0 0.0
        %869 = vmatpush2.xpose.msra.mxu0 0.0
        %870 = vmatprep.subr.mxu0 0.0
        %871 = vmatpush2.xpose.msra.mxu0 0.0
        %872 = vmatprep.subr.mxu0 0.0
        %873 = vmatpush2.xpose.msra.mxu0 0.0
        %874 = vmatprep.subr.mxu0 0.0
        %875 = vmatpush2.xpose.msra.mxu0 0.0
        %876 = vmatprep.subr.mxu0 0.0
        %877 = vmatpush2.xpose.msra.mxu0 0.0
        %878 = vmatprep.subr.mxu0 0.0
        %879 = vmatpush2.xpose.msra.mxu0 0.0
        %880 = vmatprep.subr.mxu0 0.0
        %881 = vmatpush2.xpose.msra.mxu0 0.0
        %882 = vmatprep.subr.mxu0 0.0
        %883 = vmatpush2.xpose.msra.mxu0 0.0
        %884 = vmatprep.mubr.f32.mxu0 0.0
        %885 = vmatmul.mubr.f32.gmra.mxu0 %v815
        %v886 = vpop.f32.mrf.mxu0
        %v887 = vadd.f32 0.0, %v886
        %v888 = vpop.f32.mrf.mxu0
        %889 = vdwg.mxu0
        %v890 = vsel %vm813, %v887, -inf
        %891 = vmax.xlane.f32.xlu0 %v890
        %v892 = vpop.xlane.xlu0 %891
        %v893 = vsub.f32 %v887, %v892
        %v894 = vmul.f32 %v893, 1.442695
        %v895 = vpow.pop %v894
        %v896 = vsel %vm813, %v895, 0.0
        %897 = vadd.xlane.f32.xlu0 %v896
        %v898 = vpop.xlane.xlu0 %897
        %v899 = vrcp.pop %v898
        %v900 = vmul.f32 %v895, %v899
        %v902 = vsel %vm813, %v900, 0
        %904 = vmatprep.subr.mxu0 0.0
        %905 = vmatpush1.msra.mxu0 0.0
        %906 = vmatprep.subr.mxu0 0.0
        %907 = vmatpush1.msra.mxu0 0.0
        %908 = vmatprep.subr.mxu0 0.0
        %909 = vmatpush1.msra.mxu0 0.0
        %910 = vmatprep.subr.mxu0 0.0
        %911 = vmatpush1.msra.mxu0 0.0
        %912 = vmatprep.subr.mxu0 0.0
        %913 = vmatpush1.msra.mxu0 0.0
        %914 = vmatprep.subr.mxu0 0.0
        %915 = vmatpush1.msra.mxu0 0.0
        %916 = vmatprep.subr.mxu0 0.0
        %917 = vmatpush1.msra.mxu0 0.0
        %918 = vmatprep.subr.mxu0 0.0
        %919 = vmatpush1.msra.mxu0 0.0
        %920 = vmatprep.subr.mxu0 0.0
        %921 = vmatpush1.msra.mxu0 0.0
        %922 = vmatprep.subr.mxu0 0.0
        %923 = vmatpush1.msra.mxu0 0.0
        %924 = vmatprep.subr.mxu0 0.0
        %925 = vmatpush1.msra.mxu0 0.0
        %926 = vmatprep.subr.mxu0 0.0
        %927 = vmatpush1.msra.mxu0 0.0
        %928 = vmatprep.subr.mxu0 0.0
        %929 = vmatpush1.msra.mxu0 0.0
        %930 = vmatprep.subr.mxu0 0.0
        %931 = vmatpush1.msra.mxu0 0.0
        %932 = vmatprep.subr.mxu0 0.0
        %933 = vmatpush1.msra.mxu0 0.0
        %934 = vmatprep.subr.mxu0 0.0
        %935 = vmatpush1.msra.mxu0 %v812
        %936 = vmatprep.subr.mxu0 0.0
        %937 = vmatpush2.msra.mxu0 0.0
        %938 = vmatprep.subr.mxu0 0.0
        %939 = vmatpush2.msra.mxu0 0.0
        %940 = vmatprep.subr.mxu0 0.0
        %941 = vmatpush2.msra.mxu0 0.0
        %942 = vmatprep.subr.mxu0 0.0
        %943 = vmatpush2.msra.mxu0 0.0
        %944 = vmatprep.subr.mxu0 0.0
        %945 = vmatpush2.msra.mxu0 0.0
        %946 = vmatprep.subr.mxu0 0.0
        %947 = vmatpush2.msra.mxu0 0.0
        %948 = vmatprep.subr.mxu0 0.0
        %949 = vmatpush2.msra.mxu0 0.0
        %950 = vmatprep.subr.mxu0 0.0
        %951 = vmatpush2.msra.mxu0 0.0
        %952 = vmatprep.subr.mxu0 0.0
        %953 = vmatpush2.msra.mxu0 0.0
        %954 = vmatprep.subr.mxu0 0.0
        %955 = vmatpush2.msra.mxu0 0.0
        %956 = vmatprep.subr.mxu0 0.0
        %957 = vmatpush2.msra.mxu0 0.0
        %958 = vmatprep.subr.mxu0 0.0
        %959 = vmatpush2.msra.mxu0 0.0
        %960 = vmatprep.subr.mxu0 0.0
        %961 = vmatpush2.msra.mxu0 0.0
        %962 = vmatprep.subr.mxu0 0.0
        %963 = vmatpush2.msra.mxu0 0.0
        %964 = vmatprep.subr.mxu0 0.0
        %965 = vmatpush2.msra.mxu0 0.0
        %966 = vmatprep.subr.mxu0 0.0
        %967 = vmatpush2.msra.mxu0 0.0
        %968 = vmatprep.mubr.f32.mxu0 0.0
        %969 = vmatmul.mubr.f32.gmra.mxu0 %v902
        %v970 = vpop.f32.mrf.mxu0
        %v971 = vadd.f32 0.0, %v970
        %v972 = vpop.f32.mrf.mxu0
        %973 = vdwg.mxu0
        %v974 = vld [vmem:[#allocation15] sm:$0xff]
        %975 = vrot.lane.b32.xlu0 %v808, 120
        %v976 = vpop.permute.xlu0 %975
        %977 = vrot.lane.b32.xlu0 %v811, 120
        %v978 = vpop.permute.xlu0 %977
        %v979 = vsel %vm813, %v976, 0
        %v981 = vsel %vm813, %v978, 0
        %983 = vmatprep.subr.mxu0 0.0
        %984 = vmatpush1.xpose.msra.mxu0 0.0
        %985 = vmatprep.subr.mxu0 0.0
        %986 = vmatpush1.xpose.msra.mxu0 0.0
        %987 = vmatprep.subr.mxu0 0.0
        %988 = vmatpush1.xpose.msra.mxu0 0.0
        %989 = vmatprep.subr.mxu0 0.0
        %990 = vmatpush1.xpose.msra.mxu0 0.0
        %991 = vmatprep.subr.mxu0 0.0
        %992 = vmatpush1.xpose.msra.mxu0 0.0
        %993 = vmatprep.subr.mxu0 0.0
        %994 = vmatpush1.xpose.msra.mxu0 0.0
        %995 = vmatprep.subr.mxu0 0.0
        %996 = vmatpush1.xpose.msra.mxu0 0.0
        %997 = vmatprep.subr.mxu0 0.0
        %998 = vmatpush1.xpose.msra.mxu0 0.0
        %999 = vmatprep.subr.mxu0 0.0
        %1000 = vmatpush1.xpose.msra.mxu0 0.0
        %1001 = vmatprep.subr.mxu0 0.0
        %1002 = vmatpush1.xpose.msra.mxu0 0.0
        %1003 = vmatprep.subr.mxu0 0.0
        %1004 = vmatpush1.xpose.msra.mxu0 0.0
        %1005 = vmatprep.subr.mxu0 0.0
        %1006 = vmatpush1.xpose.msra.mxu0 0.0
        %1007 = vmatprep.subr.mxu0 0.0
        %1008 = vmatpush1.xpose.msra.mxu0 0.0
        %1009 = vmatprep.subr.mxu0 0.0
        %1010 = vmatpush1.xpose.msra.mxu0 0.0
        %1011 = vmatprep.subr.mxu0 0.0
        %1012 = vmatpush1.xpose.msra.mxu0 0.0
        %1013 = vmatprep.subr.mxu0 0.0
        %1014 = vmatpush1.xpose.msra.mxu0 %v981
        %1015 = vmatprep.subr.mxu0 0.0
        %1016 = vmatpush2.xpose.msra.mxu0 0.0
        %1017 = vmatprep.subr.mxu0 0.0
        %1018 = vmatpush2.xpose.msra.mxu0 0.0
        %1019 = vmatprep.subr.mxu0 0.0
        %1020 = vmatpush2.xpose.msra.mxu0 0.0
        %1021 = vmatprep.subr.mxu0 0.0
        %1022 = vmatpush2.xpose.msra.mxu0 0.0
        %1023 = vmatprep.subr.mxu0 0.0
        %1024 = vmatpush2.xpose.msra.mxu0 0.0
        %1025 = vmatprep.subr.mxu0 0.0
        %1026 = vmatpush2.xpose.msra.mxu0 0.0
        %1027 = vmatprep.subr.mxu0 0.0
        %1028 = vmatpush2.xpose.msra.mxu0 0.0
        %1029 = vmatprep.subr.mxu0 0.0
        %1030 = vmatpush2.xpose.msra.mxu0 0.0
        %1031 = vmatprep.subr.mxu0 0.0
        %1032 = vmatpush2.xpose.msra.mxu0 0.0
        %1033 = vmatprep.subr.mxu0 0.0
        %1034 = vmatpush2.xpose.msra.mxu0 0.0
        %1035 = vmatprep.subr.mxu0 0.0
        %1036 = vmatpush2.xpose.msra.mxu0 0.0
        %1037 = vmatprep.subr.mxu0 0.0
        %1038 = vmatpush2.xpose.msra.mxu0 0.0
        %1039 = vmatprep.subr.mxu0 0.0
        %1040 = vmatpush2.xpose.msra.mxu0 0.0
        %1041 = vmatprep.subr.mxu0 0.0
        %1042 = vmatpush2.xpose.msra.mxu0 0.0
        %1043 = vmatprep.subr.mxu0 0.0
        %1044 = vmatpush2.xpose.msra.mxu0 0.0
        %1045 = vmatprep.subr.mxu0 0.0
        %1046 = vmatpush2.xpose.msra.mxu0 0.0
        %1047 = vmatprep.mubr.f32.mxu0 0.0
        %1048 = vmatmul.mubr.f32.gmra.mxu0 %v979
        %v1049 = vpop.f32.mrf.mxu0
        %v1050 = vadd.f32 0.0, %v1049
        %v1051 = vpop.f32.mrf.mxu0
        %1052 = vdwg.mxu0
        %v1053 = vsel %vm813, %v1050, -inf
        %1054 = vmax.xlane.f32.xlu0 %v1053
        %v1055 = vpop.xlane.xlu0 %1054
        %v1056 = vsub.f32 %v1050, %v1055
        %v1057 = vmul.f32 %v1056, 1.442695
        %v1058 = vpow.pop %v1057
        %v1059 = vsel %vm813, %v1058, 0.0
        %1060 = vadd.xlane.f32.xlu0 %v1059
        %v1061 = vpop.xlane.xlu0 %1060
        %v1062 = vrcp.pop %v1061
        %v1063 = vmul.f32 %v1058, %v1062
        %1065 = vrot.lane.b32.xlu0 %v812, 120
        %v1066 = vpop.permute.xlu0 %1065
        %v1069 = vsel %vm813, %v1063, 0
        %1071 = vmatprep.subr.mxu0 0.0
        %1072 = vmatpush1.msra.mxu0 0.0
        %1073 = vmatprep.subr.mxu0 0.0
        %1074 = vmatpush1.msra.mxu0 0.0
        %1075 = vmatprep.subr.mxu0 0.0
        %1076 = vmatpush1.msra.mxu0 0.0
        %1077 = vmatprep.subr.mxu0 0.0
        %1078 = vmatpush1.msra.mxu0 0.0
        %1079 = vmatprep.subr.mxu0 0.0
        %1080 = vmatpush1.msra.mxu0 0.0
        %1081 = vmatprep.subr.mxu0 0.0
        %1082 = vmatpush1.msra.mxu0 0.0
        %1083 = vmatprep.subr.mxu0 0.0
        %1084 = vmatpush1.msra.mxu0 0.0
        %1085 = vmatprep.subr.mxu0 0.0
        %1086 = vmatpush1.msra.mxu0 0.0
        %1087 = vmatprep.subr.mxu0 0.0
        %1088 = vmatpush1.msra.mxu0 0.0
        %1089 = vmatprep.subr.mxu0 0.0
        %1090 = vmatpush1.msra.mxu0 0.0
        %1091 = vmatprep.subr.mxu0 0.0
        %1092 = vmatpush1.msra.mxu0 0.0
        %1093 = vmatprep.subr.mxu0 0.0
        %1094 = vmatpush1.msra.mxu0 0.0
        %1095 = vmatprep.subr.mxu0 0.0
        %1096 = vmatpush1.msra.mxu0 0.0
        %1097 = vmatprep.subr.mxu0 0.0
        %1098 = vmatpush1.msra.mxu0 0.0
        %1099 = vmatprep.subr.mxu0 0.0
        %1100 = vmatpush1.msra.mxu0 0.0
        %1101 = vmatprep.subr.mxu0 0.0
        %1102 = vmatpush1.msra.mxu0 %v1066
        %1103 = vmatprep.subr.mxu0 0.0
        %1104 = vmatpush2.msra.mxu0 0.0
        %1105 = vmatprep.subr.mxu0 0.0
        %1106 = vmatpush2.msra.mxu0 0.0
        %1107 = vmatprep.subr.mxu0 0.0
        %1108 = vmatpush2.msra.mxu0 0.0
        %1109 = vmatprep.subr.mxu0 0.0
        %1110 = vmatpush2.msra.mxu0 0.0
        %1111 = vmatprep.subr.mxu0 0.0
        %1112 = vmatpush2.msra.mxu0 0.0
        %1113 = vmatprep.subr.mxu0 0.0
        %1114 = vmatpush2.msra.mxu0 0.0
        %1115 = vmatprep.subr.mxu0 0.0
        %1116 = vmatpush2.msra.mxu0 0.0
        %1117 = vmatprep.subr.mxu0 0.0
        %1118 = vmatpush2.msra.mxu0 0.0
        %1119 = vmatprep.subr.mxu0 0.0
        %1120 = vmatpush2.msra.mxu0 0.0
        %1121 = vmatprep.subr.mxu0 0.0
        %1122 = vmatpush2.msra.mxu0 0.0
        %1123 = vmatprep.subr.mxu0 0.0
        %1124 = vmatpush2.msra.mxu0 0.0
        %1125 = vmatprep.subr.mxu0 0.0
        %1126 = vmatpush2.msra.mxu0 0.0
        %1127 = vmatprep.subr.mxu0 0.0
        %1128 = vmatpush2.msra.mxu0 0.0
        %1129 = vmatprep.subr.mxu0 0.0
        %1130 = vmatpush2.msra.mxu0 0.0
        %1131 = vmatprep.subr.mxu0 0.0
        %1132 = vmatpush2.msra.mxu0 0.0
        %1133 = vmatprep.subr.mxu0 0.0
        %1134 = vmatpush2.msra.mxu0 0.0
        %1135 = vmatprep.mubr.f32.mxu0 0.0
        %1136 = vmatmul.mubr.f32.gmra.mxu0 %v1069
        %v1137 = vpop.f32.mrf.mxu0
        %v1138 = vadd.f32 0.0, %v1137
        %v1139 = vpop.f32.mrf.mxu0
        %1140 = vdwg.mxu0
        %v1141 = vld [vmem:[#allocation15 + $0x8] sm:$0xff]
        %v1143 = vsel %vm813, %v1138, 0
        %1145 = vmatprep.subr.mxu0 0.0
        %1146 = vmatpush1.msra.mxu0 0.0
        %1147 = vmatprep.subr.mxu0 0.0
        %1148 = vmatpush1.msra.mxu0 0.0
        %1149 = vmatprep.subr.mxu0 0.0
        %1150 = vmatpush1.msra.mxu0 0.0
        %1151 = vmatprep.subr.mxu0 0.0
        %1152 = vmatpush1.msra.mxu0 0.0
        %1153 = vmatprep.subr.mxu0 0.0
        %1154 = vmatpush1.msra.mxu0 0.0
        %1155 = vmatprep.subr.mxu0 0.0
        %1156 = vmatpush1.msra.mxu0 0.0
        %1157 = vmatprep.subr.mxu0 0.0
        %1158 = vmatpush1.msra.mxu0 0.0
        %1159 = vmatprep.subr.mxu0 0.0
        %1160 = vmatpush1.msra.mxu0 0.0
        %1161 = vmatprep.subr.mxu0 0.0
        %1162 = vmatpush1.msra.mxu0 0.0
        %1163 = vmatprep.subr.mxu0 0.0
        %1164 = vmatpush1.msra.mxu0 0.0
        %1165 = vmatprep.subr.mxu0 0.0
        %1166 = vmatpush1.msra.mxu0 0.0
        %1167 = vmatprep.subr.mxu0 0.0
        %1168 = vmatpush1.msra.mxu0 0.0
        %1169 = vmatprep.subr.mxu0 0.0
        %1170 = vmatpush1.msra.mxu0 0.0
        %1171 = vmatprep.subr.mxu0 0.0
        %1172 = vmatpush1.msra.mxu0 0.0
        %1173 = vmatprep.subr.mxu0 0.0
        %1174 = vmatpush1.msra.mxu0 0.0
        %1175 = vmatprep.subr.mxu0 0.0
        %1176 = vmatpush1.msra.mxu0 %v1141
        %1177 = vmatprep.subr.mxu0 0.0
        %1178 = vmatpush2.msra.mxu0 0.0
        %1179 = vmatprep.subr.mxu0 0.0
        %1180 = vmatpush2.msra.mxu0 0.0
        %1181 = vmatprep.subr.mxu0 0.0
        %1182 = vmatpush2.msra.mxu0 0.0
        %1183 = vmatprep.subr.mxu0 0.0
        %1184 = vmatpush2.msra.mxu0 0.0
        %1185 = vmatprep.subr.mxu0 0.0
        %1186 = vmatpush2.msra.mxu0 0.0
        %1187 = vmatprep.subr.mxu0 0.0
        %1188 = vmatpush2.msra.mxu0 0.0
        %1189 = vmatprep.subr.mxu0 0.0
        %1190 = vmatpush2.msra.mxu0 0.0
        %1191 = vmatprep.subr.mxu0 0.0
        %1192 = vmatpush2.msra.mxu0 0.0
        %1193 = vmatprep.subr.mxu0 0.0
        %1194 = vmatpush2.msra.mxu0 0.0
        %1195 = vmatprep.subr.mxu0 0.0
        %1196 = vmatpush2.msra.mxu0 0.0
        %1197 = vmatprep.subr.mxu0 0.0
        %1198 = vmatpush2.msra.mxu0 0.0
        %1199 = vmatprep.subr.mxu0 0.0
        %1200 = vmatpush2.msra.mxu0 0.0
        %1201 = vmatprep.subr.mxu0 0.0
        %1202 = vmatpush2.msra.mxu0 0.0
        %1203 = vmatprep.subr.mxu0 0.0
        %1204 = vmatpush2.msra.mxu0 0.0
        %1205 = vmatprep.subr.mxu0 0.0
        %1206 = vmatpush2.msra.mxu0 0.0
        %1207 = vmatprep.subr.mxu0 0.0
        %1208 = vmatpush2.msra.mxu0 0.0
        %1209 = vmatprep.mubr.f32.mxu0 0.0
        %1210 = vmatmul.mubr.f32.gmra.mxu0 %v1143
        %v1211 = vpop.f32.mrf.mxu0
        %v1212 = vadd.f32 0.0, %v1211
        %v1213 = vpop.f32.mrf.mxu0
        %1214 = vdwg.mxu0
        %v1216 = vsel %vm813, %v971, 0
        %1218 = vmatprep.subr.mxu0 0.0
        %1219 = vmatpush1.msra.mxu0 0.0
        %1220 = vmatprep.subr.mxu0 0.0
        %1221 = vmatpush1.msra.mxu0 0.0
        %1222 = vmatprep.subr.mxu0 0.0
        %1223 = vmatpush1.msra.mxu0 0.0
        %1224 = vmatprep.subr.mxu0 0.0
        %1225 = vmatpush1.msra.mxu0 0.0
        %1226 = vmatprep.subr.mxu0 0.0
        %1227 = vmatpush1.msra.mxu0 0.0
        %1228 = vmatprep.subr.mxu0 0.0
        %1229 = vmatpush1.msra.mxu0 0.0
        %1230 = vmatprep.subr.mxu0 0.0
        %1231 = vmatpush1.msra.mxu0 0.0
        %1232 = vmatprep.subr.mxu0 0.0
        %1233 = vmatpush1.msra.mxu0 0.0
        %1234 = vmatprep.subr.mxu0 0.0
        %1235 = vmatpush1.msra.mxu0 0.0
        %1236 = vmatprep.subr.mxu0 0.0
        %1237 = vmatpush1.msra.mxu0 0.0
        %1238 = vmatprep.subr.mxu0 0.0
        %1239 = vmatpush1.msra.mxu0 0.0
        %1240 = vmatprep.subr.mxu0 0.0
        %1241 = vmatpush1.msra.mxu0 0.0
        %1242 = vmatprep.subr.mxu0 0.0
        %1243 = vmatpush1.msra.mxu0 0.0
        %1244 = vmatprep.subr.mxu0 0.0
        %1245 = vmatpush1.msra.mxu0 0.0
        %1246 = vmatprep.subr.mxu0 0.0
        %1247 = vmatpush1.msra.mxu0 0.0
        %1248 = vmatprep.subr.mxu0 0.0
        %1249 = vmatpush1.msra.mxu0 %v974
        %1250 = vmatprep.subr.mxu0 0.0
        %1251 = vmatpush2.msra.mxu0 0.0
        %1252 = vmatprep.subr.mxu0 0.0
        %1253 = vmatpush2.msra.mxu0 0.0
        %1254 = vmatprep.subr.mxu0 0.0
        %1255 = vmatpush2.msra.mxu0 0.0
        %1256 = vmatprep.subr.mxu0 0.0
        %1257 = vmatpush2.msra.mxu0 0.0
        %1258 = vmatprep.subr.mxu0 0.0
        %1259 = vmatpush2.msra.mxu0 0.0
        %1260 = vmatprep.subr.mxu0 0.0
        %1261 = vmatpush2.msra.mxu0 0.0
        %1262 = vmatprep.subr.mxu0 0.0
        %1263 = vmatpush2.msra.mxu0 0.0
        %1264 = vmatprep.subr.mxu0 0.0
        %1265 = vmatpush2.msra.mxu0 0.0
        %1266 = vmatprep.subr.mxu0 0.0
        %1267 = vmatpush2.msra.mxu0 0.0
        %1268 = vmatprep.subr.mxu0 0.0
        %1269 = vmatpush2.msra.mxu0 0.0
        %1270 = vmatprep.subr.mxu0 0.0
        %1271 = vmatpush2.msra.mxu0 0.0
        %1272 = vmatprep.subr.mxu0 0.0
        %1273 = vmatpush2.msra.mxu0 0.0
        %1274 = vmatprep.subr.mxu0 0.0
        %1275 = vmatpush2.msra.mxu0 0.0
        %1276 = vmatprep.subr.mxu0 0.0
        %1277 = vmatpush2.msra.mxu0 0.0
        %1278 = vmatprep.subr.mxu0 0.0
        %1279 = vmatpush2.msra.mxu0 0.0
        %1280 = vmatprep.subr.mxu0 0.0
        %1281 = vmatpush2.msra.mxu0 0.0
        %1282 = vmatprep.mubr.f32.mxu0 0.0
        %1283 = vmatmul.mubr.f32.gmra.mxu0 %v1216
        %v1284 = vpop.f32.mrf.mxu0
        %v1285 = vadd.f32 %v1212, %v1284
        %v1286 = vpop.f32.mrf.mxu0
        %1287 = vdwg.mxu0
        %1288 = vrot.lane.b32.xlu0 %v808, 112
        %v1289 = vpop.permute.xlu0 %1288
        %1290 = vrot.lane.b32.xlu0 %v811, 112
        %v1291 = vpop.permute.xlu0 %1290
        %v1292 = vsel %vm813, %v1289, 0
        %v1294 = vsel %vm813, %v1291, 0
        %1296 = vmatprep.subr.mxu0 0.0
        %1297 = vmatpush1.xpose.msra.mxu0 0.0
        %1298 = vmatprep.subr.mxu0 0.0
        %1299 = vmatpush1.xpose.msra.mxu0 0.0
        %1300 = vmatprep.subr.mxu0 0.0
        %1301 = vmatpush1.xpose.msra.mxu0 0.0
        %1302 = vmatprep.subr.mxu0 0.0
        %1303 = vmatpush1.xpose.msra.mxu0 0.0
        %1304 = vmatprep.subr.mxu0 0.0
        %1305 = vmatpush1.xpose.msra.mxu0 0.0
        %1306 = vmatprep.subr.mxu0 0.0
        %1307 = vmatpush1.xpose.msra.mxu0 0.0
        %1308 = vmatprep.subr.mxu0 0.0
        %1309 = vmatpush1.xpose.msra.mxu0 0.0
        %1310 = vmatprep.subr.mxu0 0.0
        %1311 = vmatpush1.xpose.msra.mxu0 0.0
        %1312 = vmatprep.subr.mxu0 0.0
        %1313 = vmatpush1.xpose.msra.mxu0 0.0
        %1314 = vmatprep.subr.mxu0 0.0
        %1315 = vmatpush1.xpose.msra.mxu0 0.0
        %1316 = vmatprep.subr.mxu0 0.0
        %1317 = vmatpush1.xpose.msra.mxu0 0.0
        %1318 = vmatprep.subr.mxu0 0.0
        %1319 = vmatpush1.xpose.msra.mxu0 0.0
        %1320 = vmatprep.subr.mxu0 0.0
        %1321 = vmatpush1.xpose.msra.mxu0 0.0
        %1322 = vmatprep.subr.mxu0 0.0
        %1323 = vmatpush1.xpose.msra.mxu0 0.0
        %1324 = vmatprep.subr.mxu0 0.0
        %1325 = vmatpush1.xpose.msra.mxu0 0.0
        %1326 = vmatprep.subr.mxu0 0.0
        %1327 = vmatpush1.xpose.msra.mxu0 %v1294
        %1328 = vmatprep.subr.mxu0 0.0
        %1329 = vmatpush2.xpose.msra.mxu0 0.0
        %1330 = vmatprep.subr.mxu0 0.0
        %1331 = vmatpush2.xpose.msra.mxu0 0.0
        %1332 = vmatprep.subr.mxu0 0.0
        %1333 = vmatpush2.xpose.msra.mxu0 0.0
        %1334 = vmatprep.subr.mxu0 0.0
        %1335 = vmatpush2.xpose.msra.mxu0 0.0
        %1336 = vmatprep.subr.mxu0 0.0
        %1337 = vmatpush2.xpose.msra.mxu0 0.0
        %1338 = vmatprep.subr.mxu0 0.0
        %1339 = vmatpush2.xpose.msra.mxu0 0.0
        %1340 = vmatprep.subr.mxu0 0.0
        %1341 = vmatpush2.xpose.msra.mxu0 0.0
        %1342 = vmatprep.subr.mxu0 0.0
        %1343 = vmatpush2.xpose.msra.mxu0 0.0
        %1344 = vmatprep.subr.mxu0 0.0
        %1345 = vmatpush2.xpose.msra.mxu0 0.0
        %1346 = vmatprep.subr.mxu0 0.0
        %1347 = vmatpush2.xpose.msra.mxu0 0.0
        %1348 = vmatprep.subr.mxu0 0.0
        %1349 = vmatpush2.xpose.msra.mxu0 0.0
        %1350 = vmatprep.subr.mxu0 0.0
        %1351 = vmatpush2.xpose.msra.mxu0 0.0
        %1352 = vmatprep.subr.mxu0 0.0
        %1353 = vmatpush2.xpose.msra.mxu0 0.0
        %1354 = vmatprep.subr.mxu0 0.0
        %1355 = vmatpush2.xpose.msra.mxu0 0.0
        %1356 = vmatprep.subr.mxu0 0.0
        %1357 = vmatpush2.xpose.msra.mxu0 0.0
        %1358 = vmatprep.subr.mxu0 0.0
        %1359 = vmatpush2.xpose.msra.mxu0 0.0
        %1360 = vmatprep.mubr.f32.mxu0 0.0
        %1361 = vmatmul.mubr.f32.gmra.mxu0 %v1292
        %v1362 = vpop.f32.mrf.mxu0
        %v1363 = vadd.f32 0.0, %v1362
        %v1364 = vpop.f32.mrf.mxu0
        %1365 = vdwg.mxu0
        %v1366 = vsel %vm813, %v1363, -inf
        %1367 = vmax.xlane.f32.xlu0 %v1366
        %v1368 = vpop.xlane.xlu0 %1367
        %v1369 = vsub.f32 %v1363, %v1368
        %v1370 = vmul.f32 %v1369, 1.442695
        %v1371 = vpow.pop %v1370
        %v1372 = vsel %vm813, %v1371, 0.0
        %1373 = vadd.xlane.f32.xlu0 %v1372
        %v1374 = vpop.xlane.xlu0 %1373
        %v1375 = vrcp.pop %v1374
        %v1376 = vmul.f32 %v1371, %v1375
        %1377 = vrot.lane.b32.xlu0 %v812, 112
        %v1378 = vpop.permute.xlu0 %1377
        %v1381 = vsel %vm813, %v1376, 0
        %1383 = vmatprep.subr.mxu0 0.0
        %1384 = vmatpush1.msra.mxu0 0.0
        %1385 = vmatprep.subr.mxu0 0.0
        %1386 = vmatpush1.msra.mxu0 0.0
        %1387 = vmatprep.subr.mxu0 0.0
        %1388 = vmatpush1.msra.mxu0 0.0
        %1389 = vmatprep.subr.mxu0 0.0
        %1390 = vmatpush1.msra.mxu0 0.0
        %1391 = vmatprep.subr.mxu0 0.0
        %1392 = vmatpush1.msra.mxu0 0.0
        %1393 = vmatprep.subr.mxu0 0.0
        %1394 = vmatpush1.msra.mxu0 0.0
        %1395 = vmatprep.subr.mxu0 0.0
        %1396 = vmatpush1.msra.mxu0 0.0
        %1397 = vmatprep.subr.mxu0 0.0
        %1398 = vmatpush1.msra.mxu0 0.0
        %1399 = vmatprep.subr.mxu0 0.0
        %1400 = vmatpush1.msra.mxu0 0.0
        %1401 = vmatprep.subr.mxu0 0.0
        %1402 = vmatpush1.msra.mxu0 0.0
        %1403 = vmatprep.subr.mxu0 0.0
        %1404 = vmatpush1.msra.mxu0 0.0
        %1405 = vmatprep.subr.mxu0 0.0
        %1406 = vmatpush1.msra.mxu0 0.0
        %1407 = vmatprep.subr.mxu0 0.0
        %1408 = vmatpush1.msra.mxu0 0.0
        %1409 = vmatprep.subr.mxu0 0.0
        %1410 = vmatpush1.msra.mxu0 0.0
        %1411 = vmatprep.subr.mxu0 0.0
        %1412 = vmatpush1.msra.mxu0 0.0
        %1413 = vmatprep.subr.mxu0 0.0
        %1414 = vmatpush1.msra.mxu0 %v1378
        %1415 = vmatprep.subr.mxu0 0.0
        %1416 = vmatpush2.msra.mxu0 0.0
        %1417 = vmatprep.subr.mxu0 0.0
        %1418 = vmatpush2.msra.mxu0 0.0
        %1419 = vmatprep.subr.mxu0 0.0
        %1420 = vmatpush2.msra.mxu0 0.0
        %1421 = vmatprep.subr.mxu0 0.0
        %1422 = vmatpush2.msra.mxu0 0.0
        %1423 = vmatprep.subr.mxu0 0.0
        %1424 = vmatpush2.msra.mxu0 0.0
        %1425 = vmatprep.subr.mxu0 0.0
        %1426 = vmatpush2.msra.mxu0 0.0
        %1427 = vmatprep.subr.mxu0 0.0
        %1428 = vmatpush2.msra.mxu0 0.0
        %1429 = vmatprep.subr.mxu0 0.0
        %1430 = vmatpush2.msra.mxu0 0.0
        %1431 = vmatprep.subr.mxu0 0.0
        %1432 = vmatpush2.msra.mxu0 0.0
        %1433 = vmatprep.subr.mxu0 0.0
        %1434 = vmatpush2.msra.mxu0 0.0
        %1435 = vmatprep.subr.mxu0 0.0
        %1436 = vmatpush2.msra.mxu0 0.0
        %1437 = vmatprep.subr.mxu0 0.0
        %1438 = vmatpush2.msra.mxu0 0.0
        %1439 = vmatprep.subr.mxu0 0.0
        %1440 = vmatpush2.msra.mxu0 0.0
        %1441 = vmatprep.subr.mxu0 0.0
        %1442 = vmatpush2.msra.mxu0 0.0
        %1443 = vmatprep.subr.mxu0 0.0
        %1444 = vmatpush2.msra.mxu0 0.0
        %1445 = vmatprep.subr.mxu0 0.0
        %1446 = vmatpush2.msra.mxu0 0.0
        %1447 = vmatprep.mubr.f32.mxu0 0.0
        %1448 = vmatmul.mubr.f32.gmra.mxu0 %v1381
        %v1449 = vpop.f32.mrf.mxu0
        %v1450 = vadd.f32 0.0, %v1449
        %v1451 = vpop.f32.mrf.mxu0
        %1452 = vdwg.mxu0
        %v1453 = vld [vmem:[#allocation15 + $0x10] sm:$0xff]
        %v1455 = vsel %vm813, %v1450, 0
        %1457 = vmatprep.subr.mxu0 0.0
        %1458 = vmatpush1.msra.mxu0 0.0
        %1459 = vmatprep.subr.mxu0 0.0
        %1460 = vmatpush1.msra.mxu0 0.0
        %1461 = vmatprep.subr.mxu0 0.0
        %1462 = vmatpush1.msra.mxu0 0.0
        %1463 = vmatprep.subr.mxu0 0.0
        %1464 = vmatpush1.msra.mxu0 0.0
        %1465 = vmatprep.subr.mxu0 0.0
        %1466 = vmatpush1.msra.mxu0 0.0
        %1467 = vmatprep.subr.mxu0 0.0
        %1468 = vmatpush1.msra.mxu0 0.0
        %1469 = vmatprep.subr.mxu0 0.0
        %1470 = vmatpush1.msra.mxu0 0.0
        %1471 = vmatprep.subr.mxu0 0.0
        %1472 = vmatpush1.msra.mxu0 0.0
        %1473 = vmatprep.subr.mxu0 0.0
        %1474 = vmatpush1.msra.mxu0 0.0
        %1475 = vmatprep.subr.mxu0 0.0
        %1476 = vmatpush1.msra.mxu0 0.0
        %1477 = vmatprep.subr.mxu0 0.0
        %1478 = vmatpush1.msra.mxu0 0.0
        %1479 = vmatprep.subr.mxu0 0.0
        %1480 = vmatpush1.msra.mxu0 0.0
        %1481 = vmatprep.subr.mxu0 0.0
        %1482 = vmatpush1.msra.mxu0 0.0
        %1483 = vmatprep.subr.mxu0 0.0
        %1484 = vmatpush1.msra.mxu0 0.0
        %1485 = vmatprep.subr.mxu0 0.0
        %1486 = vmatpush1.msra.mxu0 0.0
        %1487 = vmatprep.subr.mxu0 0.0
        %1488 = vmatpush1.msra.mxu0 %v1453
        %1489 = vmatprep.subr.mxu0 0.0
        %1490 = vmatpush2.msra.mxu0 0.0
        %1491 = vmatprep.subr.mxu0 0.0
        %1492 = vmatpush2.msra.mxu0 0.0
        %1493 = vmatprep.subr.mxu0 0.0
        %1494 = vmatpush2.msra.mxu0 0.0
        %1495 = vmatprep.subr.mxu0 0.0
        %1496 = vmatpush2.msra.mxu0 0.0
        %1497 = vmatprep.subr.mxu0 0.0
        %1498 = vmatpush2.msra.mxu0 0.0
        %1499 = vmatprep.subr.mxu0 0.0
        %1500 = vmatpush2.msra.mxu0 0.0
        %1501 = vmatprep.subr.mxu0 0.0
        %1502 = vmatpush2.msra.mxu0 0.0
        %1503 = vmatprep.subr.mxu0 0.0
        %1504 = vmatpush2.msra.mxu0 0.0
        %1505 = vmatprep.subr.mxu0 0.0
        %1506 = vmatpush2.msra.mxu0 0.0
        %1507 = vmatprep.subr.mxu0 0.0
        %1508 = vmatpush2.msra.mxu0 0.0
        %1509 = vmatprep.subr.mxu0 0.0
        %1510 = vmatpush2.msra.mxu0 0.0
        %1511 = vmatprep.subr.mxu0 0.0
        %1512 = vmatpush2.msra.mxu0 0.0
        %1513 = vmatprep.subr.mxu0 0.0
        %1514 = vmatpush2.msra.mxu0 0.0
        %1515 = vmatprep.subr.mxu0 0.0
        %1516 = vmatpush2.msra.mxu0 0.0
        %1517 = vmatprep.subr.mxu0 0.0
        %1518 = vmatpush2.msra.mxu0 0.0
        %1519 = vmatprep.subr.mxu0 0.0
        %1520 = vmatpush2.msra.mxu0 0.0
        %1521 = vmatprep.mubr.f32.mxu0 0.0
        %1522 = vmatmul.mubr.f32.gmra.mxu0 %v1455
        %v1523 = vpop.f32.mrf.mxu0
        %v1524 = vadd.f32 0.0, %v1523
        %v1525 = vpop.f32.mrf.mxu0
        %1526 = vdwg.mxu0
        %v1527 = vadd.f32 %v1285, %v1524
        %1528 = vrot.lane.b32.xlu0 %v808, 104
        %v1529 = vpop.permute.xlu0 %1528
        %1530 = vrot.lane.b32.xlu0 %v811, 104
        %v1531 = vpop.permute.xlu0 %1530
        %v1532 = vsel %vm813, %v1529, 0
        %v1534 = vsel %vm813, %v1531, 0
        %1536 = vmatprep.subr.mxu0 0.0
        %1537 = vmatpush1.xpose.msra.mxu0 0.0
        %1538 = vmatprep.subr.mxu0 0.0
        %1539 = vmatpush1.xpose.msra.mxu0 0.0
        %1540 = vmatprep.subr.mxu0 0.0
        %1541 = vmatpush1.xpose.msra.mxu0 0.0
        %1542 = vmatprep.subr.mxu0 0.0
        %1543 = vmatpush1.xpose.msra.mxu0 0.0
        %1544 = vmatprep.subr.mxu0 0.0
        %1545 = vmatpush1.xpose.msra.mxu0 0.0
        %1546 = vmatprep.subr.mxu0 0.0
        %1547 = vmatpush1.xpose.msra.mxu0 0.0
        %1548 = vmatprep.subr.mxu0 0.0
        %1549 = vmatpush1.xpose.msra.mxu0 0.0
        %1550 = vmatprep.subr.mxu0 0.0
        %1551 = vmatpush1.xpose.msra.mxu0 0.0
        %1552 = vmatprep.subr.mxu0 0.0
        %1553 = vmatpush1.xpose.msra.mxu0 0.0
        %1554 = vmatprep.subr.mxu0 0.0
        %1555 = vmatpush1.xpose.msra.mxu0 0.0
        %1556 = vmatprep.subr.mxu0 0.0
        %1557 = vmatpush1.xpose.msra.mxu0 0.0
        %1558 = vmatprep.subr.mxu0 0.0
        %1559 = vmatpush1.xpose.msra.mxu0 0.0
        %1560 = vmatprep.subr.mxu0 0.0
        %1561 = vmatpush1.xpose.msra.mxu0 0.0
        %1562 = vmatprep.subr.mxu0 0.0
        %1563 = vmatpush1.xpose.msra.mxu0 0.0
        %1564 = vmatprep.subr.mxu0 0.0
        %1565 = vmatpush1.xpose.msra.mxu0 0.0
        %1566 = vmatprep.subr.mxu0 0.0
        %1567 = vmatpush1.xpose.msra.mxu0 %v1534
        %1568 = vmatprep.subr.mxu0 0.0
        %1569 = vmatpush2.xpose.msra.mxu0 0.0
        %1570 = vmatprep.subr.mxu0 0.0
        %1571 = vmatpush2.xpose.msra.mxu0 0.0
        %1572 = vmatprep.subr.mxu0 0.0
        %1573 = vmatpush2.xpose.msra.mxu0 0.0
        %1574 = vmatprep.subr.mxu0 0.0
        %1575 = vmatpush2.xpose.msra.mxu0 0.0
        %1576 = vmatprep.subr.mxu0 0.0
        %1577 = vmatpush2.xpose.msra.mxu0 0.0
        %1578 = vmatprep.subr.mxu0 0.0
        %1579 = vmatpush2.xpose.msra.mxu0 0.0
        %1580 = vmatprep.subr.mxu0 0.0
        %1581 = vmatpush2.xpose.msra.mxu0 0.0
        %1582 = vmatprep.subr.mxu0 0.0
        %1583 = vmatpush2.xpose.msra.mxu0 0.0
        %1584 = vmatprep.subr.mxu0 0.0
        %1585 = vmatpush2.xpose.msra.mxu0 0.0
        %1586 = vmatprep.subr.mxu0 0.0
        %1587 = vmatpush2.xpose.msra.mxu0 0.0
        %1588 = vmatprep.subr.mxu0 0.0
        %1589 = vmatpush2.xpose.msra.mxu0 0.0
        %1590 = vmatprep.subr.mxu0 0.0
        %1591 = vmatpush2.xpose.msra.mxu0 0.0
        %1592 = vmatprep.subr.mxu0 0.0
        %1593 = vmatpush2.xpose.msra.mxu0 0.0
        %1594 = vmatprep.subr.mxu0 0.0
        %1595 = vmatpush2.xpose.msra.mxu0 0.0
        %1596 = vmatprep.subr.mxu0 0.0
        %1597 = vmatpush2.xpose.msra.mxu0 0.0
        %1598 = vmatprep.subr.mxu0 0.0
        %1599 = vmatpush2.xpose.msra.mxu0 0.0
        %1600 = vmatprep.mubr.f32.mxu0 0.0
        %1601 = vmatmul.mubr.f32.gmra.mxu0 %v1532
        %v1602 = vpop.f32.mrf.mxu0
        %v1603 = vadd.f32 0.0, %v1602
        %v1604 = vpop.f32.mrf.mxu0
        %1605 = vdwg.mxu0
        %v1606 = vsel %vm813, %v1603, -inf
        %1607 = vmax.xlane.f32.xlu0 %v1606
        %v1608 = vpop.xlane.xlu0 %1607
        %v1609 = vsub.f32 %v1603, %v1608
        %v1610 = vmul.f32 %v1609, 1.442695
        %v1611 = vpow.pop %v1610
        %v1612 = vsel %vm813, %v1611, 0.0
        %1613 = vadd.xlane.f32.xlu0 %v1612
        %v1614 = vpop.xlane.xlu0 %1613
        %v1615 = vrcp.pop %v1614
        %v1616 = vmul.f32 %v1611, %v1615
        %1617 = vrot.lane.b32.xlu0 %v812, 104
        %v1618 = vpop.permute.xlu0 %1617
        %v1621 = vsel %vm813, %v1616, 0
        %1623 = vmatprep.subr.mxu0 0.0
        %1624 = vmatpush1.msra.mxu0 0.0
        %1625 = vmatprep.subr.mxu0 0.0
        %1626 = vmatpush1.msra.mxu0 0.0
        %1627 = vmatprep.subr.mxu0 0.0
        %1628 = vmatpush1.msra.mxu0 0.0
        %1629 = vmatprep.subr.mxu0 0.0
        %1630 = vmatpush1.msra.mxu0 0.0
        %1631 = vmatprep.subr.mxu0 0.0
        %1632 = vmatpush1.msra.mxu0 0.0
        %1633 = vmatprep.subr.mxu0 0.0
        %1634 = vmatpush1.msra.mxu0 0.0
        %1635 = vmatprep.subr.mxu0 0.0
        %1636 = vmatpush1.msra.mxu0 0.0
        %1637 = vmatprep.subr.mxu0 0.0
        %1638 = vmatpush1.msra.mxu0 0.0
        %1639 = vmatprep.subr.mxu0 0.0
        %1640 = vmatpush1.msra.mxu0 0.0
        %1641 = vmatprep.subr.mxu0 0.0
        %1642 = vmatpush1.msra.mxu0 0.0
        %1643 = vmatprep.subr.mxu0 0.0
        %1644 = vmatpush1.msra.mxu0 0.0
        %1645 = vmatprep.subr.mxu0 0.0
        %1646 = vmatpush1.msra.mxu0 0.0
        %1647 = vmatprep.subr.mxu0 0.0
        %1648 = vmatpush1.msra.mxu0 0.0
        %1649 = vmatprep.subr.mxu0 0.0
        %1650 = vmatpush1.msra.mxu0 0.0
        %1651 = vmatprep.subr.mxu0 0.0
        %1652 = vmatpush1.msra.mxu0 0.0
        %1653 = vmatprep.subr.mxu0 0.0
        %1654 = vmatpush1.msra.mxu0 %v1618
        %1655 = vmatprep.subr.mxu0 0.0
        %1656 = vmatpush2.msra.mxu0 0.0
        %1657 = vmatprep.subr.mxu0 0.0
        %1658 = vmatpush2.msra.mxu0 0.0
        %1659 = vmatprep.subr.mxu0 0.0
        %1660 = vmatpush2.msra.mxu0 0.0
        %1661 = vmatprep.subr.mxu0 0.0
        %1662 = vmatpush2.msra.mxu0 0.0
        %1663 = vmatprep.subr.mxu0 0.0
        %1664 = vmatpush2.msra.mxu0 0.0
        %1665 = vmatprep.subr.mxu0 0.0
        %1666 = vmatpush2.msra.mxu0 0.0
        %1667 = vmatprep.subr.mxu0 0.0
        %1668 = vmatpush2.msra.mxu0 0.0
        %1669 = vmatprep.subr.mxu0 0.0
        %1670 = vmatpush2.msra.mxu0 0.0
        %1671 = vmatprep.subr.mxu0 0.0
        %1672 = vmatpush2.msra.mxu0 0.0
        %1673 = vmatprep.subr.mxu0 0.0
        %1674 = vmatpush2.msra.mxu0 0.0
        %1675 = vmatprep.subr.mxu0 0.0
        %1676 = vmatpush2.msra.mxu0 0.0
        %1677 = vmatprep.subr.mxu0 0.0
        %1678 = vmatpush2.msra.mxu0 0.0
        %1679 = vmatprep.subr.mxu0 0.0
        %1680 = vmatpush2.msra.mxu0 0.0
        %1681 = vmatprep.subr.mxu0 0.0
        %1682 = vmatpush2.msra.mxu0 0.0
        %1683 = vmatprep.subr.mxu0 0.0
        %1684 = vmatpush2.msra.mxu0 0.0
        %1685 = vmatprep.subr.mxu0 0.0
        %1686 = vmatpush2.msra.mxu0 0.0
        %1687 = vmatprep.mubr.f32.mxu0 0.0
        %1688 = vmatmul.mubr.f32.gmra.mxu0 %v1621
        %v1689 = vpop.f32.mrf.mxu0
        %v1690 = vadd.f32 0.0, %v1689
        %v1691 = vpop.f32.mrf.mxu0
        %1692 = vdwg.mxu0
        %v1693 = vld [vmem:[#allocation15 + $0x18] sm:$0xff]
        %v1695 = vsel %vm813, %v1690, 0
        %1697 = vmatprep.subr.mxu0 0.0
        %1698 = vmatpush1.msra.mxu0 0.0
        %1699 = vmatprep.subr.mxu0 0.0
        %1700 = vmatpush1.msra.mxu0 0.0
        %1701 = vmatprep.subr.mxu0 0.0
        %1702 = vmatpush1.msra.mxu0 0.0
        %1703 = vmatprep.subr.mxu0 0.0
        %1704 = vmatpush1.msra.mxu0 0.0
        %1705 = vmatprep.subr.mxu0 0.0
        %1706 = vmatpush1.msra.mxu0 0.0
        %1707 = vmatprep.subr.mxu0 0.0
        %1708 = vmatpush1.msra.mxu0 0.0
        %1709 = vmatprep.subr.mxu0 0.0
        %1710 = vmatpush1.msra.mxu0 0.0
        %1711 = vmatprep.subr.mxu0 0.0
        %1712 = vmatpush1.msra.mxu0 0.0
        %1713 = vmatprep.subr.mxu0 0.0
        %1714 = vmatpush1.msra.mxu0 0.0
        %1715 = vmatprep.subr.mxu0 0.0
        %1716 = vmatpush1.msra.mxu0 0.0
        %1717 = vmatprep.subr.mxu0 0.0
        %1718 = vmatpush1.msra.mxu0 0.0
        %1719 = vmatprep.subr.mxu0 0.0
        %1720 = vmatpush1.msra.mxu0 0.0
        %1721 = vmatprep.subr.mxu0 0.0
        %1722 = vmatpush1.msra.mxu0 0.0
        %1723 = vmatprep.subr.mxu0 0.0
        %1724 = vmatpush1.msra.mxu0 0.0
        %1725 = vmatprep.subr.mxu0 0.0
        %1726 = vmatpush1.msra.mxu0 0.0
        %1727 = vmatprep.subr.mxu0 0.0
        %1728 = vmatpush1.msra.mxu0 %v1693
        %1729 = vmatprep.subr.mxu0 0.0
        %1730 = vmatpush2.msra.mxu0 0.0
        %1731 = vmatprep.subr.mxu0 0.0
        %1732 = vmatpush2.msra.mxu0 0.0
        %1733 = vmatprep.subr.mxu0 0.0
        %1734 = vmatpush2.msra.mxu0 0.0
        %1735 = vmatprep.subr.mxu0 0.0
        %1736 = vmatpush2.msra.mxu0 0.0
        %1737 = vmatprep.subr.mxu0 0.0
        %1738 = vmatpush2.msra.mxu0 0.0
        %1739 = vmatprep.subr.mxu0 0.0
        %1740 = vmatpush2.msra.mxu0 0.0
        %1741 = vmatprep.subr.mxu0 0.0
        %1742 = vmatpush2.msra.mxu0 0.0
        %1743 = vmatprep.subr.mxu0 0.0
        %1744 = vmatpush2.msra.mxu0 0.0
        %1745 = vmatprep.subr.mxu0 0.0
        %1746 = vmatpush2.msra.mxu0 0.0
        %1747 = vmatprep.subr.mxu0 0.0
        %1748 = vmatpush2.msra.mxu0 0.0
        %1749 = vmatprep.subr.mxu0 0.0
        %1750 = vmatpush2.msra.mxu0 0.0
        %1751 = vmatprep.subr.mxu0 0.0
        %1752 = vmatpush2.msra.mxu0 0.0
        %1753 = vmatprep.subr.mxu0 0.0
        %1754 = vmatpush2.msra.mxu0 0.0
        %1755 = vmatprep.subr.mxu0 0.0
        %1756 = vmatpush2.msra.mxu0 0.0
        %1757 = vmatprep.subr.mxu0 0.0
        %1758 = vmatpush2.msra.mxu0 0.0
        %1759 = vmatprep.subr.mxu0 0.0
        %1760 = vmatpush2.msra.mxu0 0.0
        %1761 = vmatprep.mubr.f32.mxu0 0.0
        %1762 = vmatmul.mubr.f32.gmra.mxu0 %v1695
        %v1763 = vpop.f32.mrf.mxu0
        %v1764 = vadd.f32 0.0, %v1763
        %v1765 = vpop.f32.mrf.mxu0
        %1766 = vdwg.mxu0
        %v1767 = vadd.f32 %v1527, %v1764
        %v1768 = vld [vmem:[%s10] sm:$0x1]
        %v1770 = vlaneseq
        %v1771 = vshrl.u32 %v1770, 7
        %v1772 = vsub.s32 0, %v1771
        %v1773 = vrot.slane %v1768, %v1772
        %v1775 = vadd.f32 %v1767, %v1773
        %1776 = vst.msk [vmem:[%s547] sm:$0xff] %vm737, %v1775
        %s1777 = sand.u32 %s303, 1
        %s1778 = scalar_lea.sflag [#allocation6], %s1777
        %s1779 = sand.u32 %s303, 1
        %s1780 = smul.addr %s1779, 8
        %s1781 = scalar_lea.vmem [#allocation16], %s1780
        // Predicated region
        $region97: #{tpu_custom_call.1} parent=63 // pred_check
          %p1782 = pneg %p313
        $region98: #{tpu_custom_call.1} parent=63 // pred_check_branch
          %1784 = sbr.rel (%p1782) target = $region100
        $region99: #{tpu_custom_call.1} parent=63 // pred_region
          %s1786 = ssub.s32 128, 128
          %1787 = vsyncadd %s1778, %s1786
          %s1788 = sadd.s32 %s38, %s37
          %s1789 = smul.addr %s1788, 128
          %s1790 = scalar_lea.hbm %s11, %s1789
          %s1792 = sshll.u32 %s1781, 4
          %s1793 = int_to_ptr.vmem [resolvable:$true] %s1792
          %1795 = dma.vmem_to_hbm [thread:$0]  %s1793, 128, %s1790, %s1778
        $region100: #{tpu_custom_call.1} parent=63 // pred_fallthru
          _
      $region64: #{tpu_custom_call.1} parent=5 // pred_fallthru
        _
      %p1796 = scmp.le.s32.totalorder 2, %s28
      // Predicated region
      $region101: #{tpu_custom_call.1} parent=5 // pred_check
        %p1797 = pneg %p1796
      $region102: #{tpu_custom_call.1} parent=5 // pred_check_branch
        %1799 = sbr.rel (%p1797) target = $region104
      $region103: #{tpu_custom_call.1} parent=5 // pred_region
        %s1800 = ssub.s32 %s28, 2
        // Predicated region
        $region105: #{tpu_custom_call.1} parent=103 // pred_check
          %p1801 = pneg %p319
        $region106: #{tpu_custom_call.1} parent=103 // pred_check_branch
          %1803 = sbr.rel (%p1801) target = $region108
        $region107: #{tpu_custom_call.1} parent=103 // pred_region
          %s1804 = sand.u32 %s304, 1
          %s1805 = scalar_lea.sflag [#allocation6], %s1804
          %s1806 = sand.u32 %s304, 1
          %s1807 = smul.addr %s1806, 8
          %s1808 = scalar_lea.vmem [#allocation16], %s1807
          %1809 = dma.done %s1805, 128
        $region108: #{tpu_custom_call.1} parent=103 // pred_fallthru
          _
      $region104: #{tpu_custom_call.1} parent=5 // pred_fallthru
        _
    $region6: #{tpu_custom_call.1} parent=1 // loop_footer
      %s32 = sadd.s32 1, %s28
    $region7: #{tpu_custom_call.1} parent=1 // loop_footer_branch
      %27 = sbr.rel target = $region3
    $region8: #{tpu_custom_call.1} parent=1 // loop_exit
      _
    %1810 = vsyncpa [#allocation5], 1
    %s1811 = scalar_lea.sflag [#allocation5], 1
    %1812 = vsyncpa %s1811, 1
    %1813 = vsyncpa [#allocation8], 1
    %s1814 = scalar_lea.sflag [#allocation8], 1
    %1815 = vsyncpa %s1814, 1
    %1816 = vsyncpa [#allocation11], 1
    %1817 = vsyncpa [#allocation14], 1
    %1818 = vsyncpa [#allocation6], 1
    %s1819 = scalar_lea.sflag [#allocation6], 1
    %1820 = vsyncpa %s1819, 1

</llo_original>
